<compile_context>
chip_gen: v7x
topology: tpu7x:2x2x1
jax: 0.10.0
libtpu: 0.0.40
codegen_flags: <defaults>
</compile_context>

<pallas_src>
import jax
import jax.numpy as jnp
from jax.experimental import pallas as pl
from jax.experimental.pallas import tpu as pltpu


def _round_up(x, m):
    return (x + m - 1) // m * m


# ----------------------------------------------------------------------------
# Fused kernel factory
# ----------------------------------------------------------------------------
def _make_fused_lstm_kernel(num_layers, seq_len, batch_pad, hidden):
    S, B, H, L = seq_len, batch_pad, hidden, num_layers

    def kernel(*refs):
        idx = 0
        x_ref = refs[idx]; idx += 1                       # (S*B, In)   bf16
        w_ih0_ref = refs[idx]; idx += 1                   # (In, 4H)    bf16
        w_hh0_ref = refs[idx]; idx += 1                   # (H, 4H)     bf16
        wcat_refs = list(refs[idx:idx + (L - 1)]); idx += L - 1   # (2H,4H) bf16
        bias_refs = list(refs[idx:idx + L]); idx += L             # (1,4H)  f32
        fc1w_ref = refs[idx]                              # (H, 256)    bf16
        fc1b_ref = refs[idx + 1]                          # (1, 256)    f32
        fc2w_ref = refs[idx + 2]                          # (256, Cp)   bf16
        fc2b_ref = refs[idx + 3]                          # (1, Cp)     f32
        out_ref = refs[idx + 4]                           # (B, Cp)     f32

        # Hoisted layer-0 input projection for the WHOLE sequence: one
        # (S*B, In) x (In, 4H) bf16 matmul (f32 acc), off the recurrent path.
        gx0 = jnp.dot(x_ref[...], w_ih0_ref[...],
                      preferred_element_type=jnp.float32) + bias_refs[0][...]

        w_hh0 = w_hh0_ref[...]
        wcats = [r[...] for r in wcat_refs]
        biases = [r[...] for r in bias_refs]

        def lstm_cell(gates, c_prev):
            # Two full-vreg EUP passes; gate extraction = static lane slices.
            sg = jax.nn.sigmoid(gates)                    # (B, 4H)
            tg = jnp.tanh(gates)                          # (B, 4H)
            i_g = sg[:, 0 * H:1 * H]
            f_g = sg[:, 1 * H:2 * H]
            g_g = tg[:, 2 * H:3 * H]
            o_g = sg[:, 3 * H:4 * H]
            c_new = f_g * c_prev + i_g * g_g
            h_new = o_g * jnp.tanh(c_new)
            return h_new, c_new

        h = [jnp.zeros((B, H), jnp.float32) for _ in range(L)]
        c = [jnp.zeros((B, H), jnp.float32) for _ in range(L)]

        # Wavefront: diagonal d runs layer l at time t = d - l.  Every cell on
        # a diagonal reads only the previous diagonal's snapshot, so the
        # matmuls of different layers on one diagonal are independent.
        for d in range(S + L - 1):
            h_snap = list(h)
            c_snap = list(c)
            for l in range(L):
                t = d - l
                if not (0 <= t < S):
                    continue
                if l == 0:
                    g = gx0[t * B:(t + 1) * B, :] + jnp.dot(
                        h_snap[0].astype(jnp.bfloat16), w_hh0,
                        preferred_element_type=jnp.float32)
                else:
                    # Folded input + recurrent projection:
                    # [h_below_t, h_prev_{t-1}] @ [[W_ih^T], [W_hh^T]]
                    hb = jnp.concatenate(
                        [h_snap[l - 1], h_snap[l]], axis=1).astype(jnp.bfloat16)
                    g = jnp.dot(hb, wcats[l - 1],
                                preferred_element_type=jnp.float32) + biases[l]
                h[l], c[l] = lstm_cell(g, c_snap[l])

        # FC head on the top layer's last-step hidden state (fused in-kernel).
        z = jnp.dot(h[L - 1].astype(jnp.bfloat16), fc1w_ref[...],
                    preferred_element_type=jnp.float32) + fc1b_ref[...]
        z = jnp.maximum(z, 0.0)
        y = jnp.dot(z.astype(jnp.bfloat16), fc2w_ref[...],
                    preferred_element_type=jnp.float32) + fc2b_ref[...]
        out_ref[...] = y.astype(out_ref.dtype)

    return kernel


# ----------------------------------------------------------------------------
# Parameters (PyTorch-style uniform(-1/sqrt(fan), 1/sqrt(fan)) init), f32
# ----------------------------------------------------------------------------
def init_params(key, input_size, hidden_size, num_layers, num_classes):
    params = {"lstm": []}
    k = 1.0 / jnp.sqrt(jnp.float32(hidden_size))

    keys = jax.random.split(key, num_layers * 4 + 4)
    ki = 0
    for layer in range(num_layers):
        in_sz = input_size if layer == 0 else hidden_size
        w_ih = jax.random.uniform(keys[ki], (4 * hidden_size, in_sz),
                                  jnp.float32, -k, k); ki += 1
        w_hh = jax.random.uniform(keys[ki], (4 * hidden_size, hidden_size),
                                  jnp.float32, -k, k); ki += 1
        b_ih = jax.random.uniform(keys[ki], (4 * hidden_size,),
                                  jnp.float32, -k, k); ki += 1
        b_hh = jax.random.uniform(keys[ki], (4 * hidden_size,),
                                  jnp.float32, -k, k); ki += 1
        params["lstm"].append({
            "w_ih_t": w_ih.T,                       # (In, 4H)
            "w_hh_t": w_hh.T,                       # (H, 4H)
            "bias": (b_ih + b_hh)[None, :],         # (1, 4H)
        })

    k1 = 1.0 / jnp.sqrt(jnp.float32(hidden_size))
    w1 = jax.random.uniform(keys[ki], (256, hidden_size), jnp.float32, -k1, k1); ki += 1
    b1 = jax.random.uniform(keys[ki], (256,), jnp.float32, -k1, k1); ki += 1
    k2 = 1.0 / jnp.sqrt(jnp.float32(256))
    w2 = jax.random.uniform(keys[ki], (num_classes, 256), jnp.float32, -k2, k2); ki += 1
    b2 = jax.random.uniform(keys[ki], (num_classes,), jnp.float32, -k2, k2); ki += 1

    params["fc1"] = {"w_t": w1.T, "b": b1[None, :]}   # (H, 256), (1, 256)
    params["fc2"] = {"w_t": w2.T, "b": b2[None, :]}   # (256, C), (1, C)
    return params


# ----------------------------------------------------------------------------
# Forward wrapper — one pallas_call for the entire network
# ----------------------------------------------------------------------------
@jax.jit
def lstm_forward(params, x):
    """x: (batch, input_size, seq_len), as the PyTorch module expects."""
    B, In, S = x.shape
    num_layers = len(params["lstm"])
    H = params["lstm"][0]["w_hh_t"].shape[0]
    C = params["fc2"]["w_t"].shape[1]

    Bp = _round_up(max(B, 8), 8)          # sublane-pad batch
    Cp = _round_up(max(C, 128), 128)      # lane-pad classes for unmasked stores

    # (B, In, S) -> time-major (S, Bp, In) -> (S*Bp, In), bf16 for the MXU.
    x_t = jnp.transpose(x, (2, 0, 1)).astype(jnp.float32)
    x_t = jnp.pad(x_t, ((0, 0), (0, Bp - B), (0, 0)))
    x2d = x_t.reshape(S * Bp, In).astype(jnp.bfloat16)

    bf16 = jnp.bfloat16
    lstm0 = params["lstm"][0]
    inputs = [x2d,
              lstm0["w_ih_t"].astype(bf16),
              lstm0["w_hh_t"].astype(bf16)]
    for lp in params["lstm"][1:]:
        inputs.append(jnp.concatenate([lp["w_ih_t"], lp["w_hh_t"]],
                                      axis=0).astype(bf16))      # (2H, 4H)
    for lp in params["lstm"]:
        inputs.append(lp["bias"])                                # (1, 4H) f32
    fc2w = jnp.pad(params["fc2"]["w_t"], ((0, 0), (0, Cp - C)))
    fc2b = jnp.pad(params["fc2"]["b"], ((0, 0), (0, Cp - C)))
    inputs += [params["fc1"]["w_t"].astype(bf16), params["fc1"]["b"],
               fc2w.astype(bf16), fc2b]

    kernel = _make_fused_lstm_kernel(num_layers, S, Bp, H)
    out = pl.pallas_call(
        kernel,
        out_shape=jax.ShapeDtypeStruct((Bp, Cp), jnp.float32),
        compiler_params=pltpu.CompilerParams(vmem_limit_bytes=32 * 1024 * 1024),
    )(*inputs)
    return out[:B, :C]


# ----------------------------------------------------------------------------
# Pure-JAX f32 reference (eval-mode PyTorch semantics) for validation
# ----------------------------------------------------------------------------
def lstm_forward_ref(params, x):
    B, In, S = x.shape
    H = params["lstm"][0]["w_hh_t"].shape[0]
    layer_in = jnp.transpose(x, (0, 2, 1)).astype(jnp.float32)   # (B, S, In)
    h = None
    for lp in params["lstm"]:
        h = jnp.zeros((B, H), jnp.float32)
        c = jnp.zeros((B, H), jnp.float32)
        outs = []
        for t in range(S):
            g = layer_in[:, t, :] @ lp["w_ih_t"] + h @ lp["w_hh_t"] + lp["bias"]
            i_g = jax.nn.sigmoid(g[:, 0 * H:1 * H])
            f_g = jax.nn.sigmoid(g[:, 1 * H:2 * H])
            g_g = jnp.tanh(g[:, 2 * H:3 * H])
            o_g = jax.nn.sigmoid(g[:, 3 * H:4 * H])
            c = f_g * c + i_g * g_g
            h = o_g * jnp.tanh(c)
            outs.append(h)
        layer_in = jnp.stack(outs, axis=1)
    z = jnp.maximum(h @ params["fc1"]["w_t"] + params["fc1"]["b"], 0.0)
    return z @ params["fc2"]["w_t"] + params["fc2"]["b"]


if __name__ == "__main__":
    input_size = 16
    hidden_size = 32
    num_layers = 2
    num_classes = 10
    dropout = 0.2          # identity in eval mode
    batch = 2
    seq_len = 8

    key = jax.random.PRNGKey(0)
    pkey, xkey = jax.random.split(key)
    params = init_params(pkey, input_size, hidden_size, num_layers, num_classes)

    # Input as the PyTorch module expects: (batch, input_size, seq_len)
    x = jax.random.normal(xkey, (batch, input_size, seq_len), jnp.float32)

    out = lstm_forward(params, x)
    jax.block_until_ready(out)
    assert out.shape == (batch, num_classes)
    assert bool(jnp.all(jnp.isfinite(out)))

    ref = lstm_forward_ref(params, x)
    # bf16 MXU operands (f32 accumulation) => small deviation vs f32 reference.
    assert bool(jnp.allclose(out, ref, rtol=5e-2, atol=5e-2)), (
        f"max abs err {float(jnp.max(jnp.abs(out - ref)))}")
    print("KERNEL_OK")
</pallas_src>

<mosaic_0001>
module attributes {stable_mosaic.version = 11 : i64} {
  func.func @kernel(%arg0: memref<64x16xbf16, #tpu.memory_space<vmem>>, %arg1: memref<16x128xbf16, #tpu.memory_space<vmem>>, %arg2: memref<32x128xbf16, #tpu.memory_space<vmem>>, %arg3: memref<64x128xbf16, #tpu.memory_space<vmem>>, %arg4: memref<1x128xf32, #tpu.memory_space<vmem>>, %arg5: memref<1x128xf32, #tpu.memory_space<vmem>>, %arg6: memref<32x256xbf16, #tpu.memory_space<vmem>>, %arg7: memref<1x256xf32, #tpu.memory_space<vmem>>, %arg8: memref<256x128xbf16, #tpu.memory_space<vmem>>, %arg9: memref<1x128xf32, #tpu.memory_space<vmem>>, %arg10: memref<8x128xf32, #tpu.memory_space<vmem>>) attributes {dimension_semantics = [], scalar_prefetch = 0 : i64, scratch_operands = 0 : i64, tpu.core_type = #tpu.core_type<tc>} {
    %c0 = arith.constant 0 : index
    %c0_0 = arith.constant 0 : index
    %0 = vector.load %arg0[%c0, %c0_0] : memref<64x16xbf16, #tpu.memory_space<vmem>>, vector<64x16xbf16>
    %c0_1 = arith.constant 0 : index
    %c0_2 = arith.constant 0 : index
    %1 = vector.load %arg1[%c0_1, %c0_2] : memref<16x128xbf16, #tpu.memory_space<vmem>>, vector<16x128xbf16>
    %cst = arith.constant dense<0.000000e+00> : vector<64x128xf32>
    %2 = tpu.matmul %0, %1, %cst {dimension_numbers = #tpu.dot_dimension_numbers<[1], [0], [0], [1], [0, 0, 1, 1], [], []>} : vector<64x16xbf16>, vector<16x128xbf16>, vector<64x128xf32> -> vector<64x128xf32>
    %c0_3 = arith.constant 0 : index
    %c0_4 = arith.constant 0 : index
    %3 = vector.load %arg4[%c0_3, %c0_4] : memref<1x128xf32, #tpu.memory_space<vmem>>, vector<1x128xf32>
    %4 = vector.broadcast %3 : vector<1x128xf32> to vector<64x128xf32>
    %5 = arith.addf %2, %4 : vector<64x128xf32>
    %c0_5 = arith.constant 0 : index
    %c0_6 = arith.constant 0 : index
    %6 = vector.load %arg2[%c0_5, %c0_6] : memref<32x128xbf16, #tpu.memory_space<vmem>>, vector<32x128xbf16>
    %c0_7 = arith.constant 0 : index
    %c0_8 = arith.constant 0 : index
    %7 = vector.load %arg3[%c0_7, %c0_8] : memref<64x128xbf16, #tpu.memory_space<vmem>>, vector<64x128xbf16>
    %c0_9 = arith.constant 0 : index
    %c0_10 = arith.constant 0 : index
    %8 = vector.load %arg5[%c0_9, %c0_10] : memref<1x128xf32, #tpu.memory_space<vmem>>, vector<1x128xf32>
    %cst_11 = arith.constant 0.000000e+00 : f32
    %9 = vector.broadcast %cst_11 : f32 to vector<8x32xf32>
    %cst_12 = arith.constant 0.000000e+00 : f32
    %10 = vector.broadcast %cst_12 : f32 to vector<8x32xf32>
    %cst_13 = arith.constant 0.000000e+00 : f32
    %11 = vector.broadcast %cst_13 : f32 to vector<8x32xf32>
    %cst_14 = arith.constant 0.000000e+00 : f32
    %12 = vector.broadcast %cst_14 : f32 to vector<8x32xf32>
    %13 = vector.extract_strided_slice %5 {offsets = [0, 0], sizes = [8, 128], strides = [1, 1]} : vector<64x128xf32> to vector<8x128xf32>
    %14 = arith.truncf %9 : vector<8x32xf32> to vector<8x32xbf16>
    %cst_15 = arith.constant dense<0.000000e+00> : vector<8x128xf32>
    %15 = tpu.matmul %14, %6, %cst_15 {dimension_numbers = #tpu.dot_dimension_numbers<[1], [0], [0], [1], [0, 0, 1, 1], [], []>} : vector<8x32xbf16>, vector<32x128xbf16>, vector<8x128xf32> -> vector<8x128xf32>
    %16 = arith.addf %13, %15 : vector<8x128xf32>
    %17 = arith.negf %16 : vector<8x128xf32>
    %18 = math.exp %17 : vector<8x128xf32>
    %cst_16 = arith.constant 1.000000e+00 : f32
    %19 = vector.broadcast %cst_16 : f32 to vector<8x128xf32>
    %20 = arith.addf %19, %18 : vector<8x128xf32>
    %21 = arith.divf %19, %20 : vector<8x128xf32>
    %22 = math.tanh %16 : vector<8x128xf32>
    %23 = vector.extract_strided_slice %21 {offsets = [0, 0], sizes = [8, 32], strides = [1, 1]} : vector<8x128xf32> to vector<8x32xf32>
    %24 = vector.extract_strided_slice %21 {offsets = [0, 32], sizes = [8, 32], strides = [1, 1]} : vector<8x128xf32> to vector<8x32xf32>
    %25 = vector.extract_strided_slice %22 {offsets = [0, 64], sizes = [8, 32], strides = [1, 1]} : vector<8x128xf32> to vector<8x32xf32>
    %26 = vector.extract_strided_slice %21 {offsets = [0, 96], sizes = [8, 32], strides = [1, 1]} : vector<8x128xf32> to vector<8x32xf32>
    %27 = arith.mulf %24, %11 : vector<8x32xf32>
    %28 = arith.mulf %23, %25 : vector<8x32xf32>
    %29 = arith.addf %27, %28 : vector<8x32xf32>
    %30 = math.tanh %29 : vector<8x32xf32>
    %31 = arith.mulf %26, %30 : vector<8x32xf32>
    %32 = vector.extract_strided_slice %5 {offsets = [8, 0], sizes = [8, 128], strides = [1, 1]} : vector<64x128xf32> to vector<8x128xf32>
    %33 = arith.truncf %31 : vector<8x32xf32> to vector<8x32xbf16>
    %cst_17 = arith.constant dense<0.000000e+00> : vector<8x128xf32>
    %34 = tpu.matmul %33, %6, %cst_17 {dimension_numbers = #tpu.dot_dimension_numbers<[1], [0], [0], [1], [0, 0, 1, 1], [], []>} : vector<8x32xbf16>, vector<32x128xbf16>, vector<8x128xf32> -> vector<8x128xf32>
    %35 = arith.addf %32, %34 : vector<8x128xf32>
    %36 = arith.negf %35 : vector<8x128xf32>
    %37 = math.exp %36 : vector<8x128xf32>
    %cst_18 = arith.constant 1.000000e+00 : f32
    %38 = vector.broadcast %cst_18 : f32 to vector<8x128xf32>
    %39 = arith.addf %38, %37 : vector<8x128xf32>
    %40 = arith.divf %38, %39 : vector<8x128xf32>
    %41 = math.tanh %35 : vector<8x128xf32>
    %42 = vector.extract_strided_slice %40 {offsets = [0, 0], sizes = [8, 32], strides = [1, 1]} : vector<8x128xf32> to vector<8x32xf32>
    %43 = vector.extract_strided_slice %40 {offsets = [0, 32], sizes = [8, 32], strides = [1, 1]} : vector<8x128xf32> to vector<8x32xf32>
    %44 = vector.extract_strided_slice %41 {offsets = [0, 64], sizes = [8, 32], strides = [1, 1]} : vector<8x128xf32> to vector<8x32xf32>
    %45 = vector.extract_strided_slice %40 {offsets = [0, 96], sizes = [8, 32], strides = [1, 1]} : vector<8x128xf32> to vector<8x32xf32>
    %46 = arith.mulf %43, %29 : vector<8x32xf32>
    %47 = arith.mulf %42, %44 : vector<8x32xf32>
    %48 = arith.addf %46, %47 : vector<8x32xf32>
    %49 = math.tanh %48 : vector<8x32xf32>
    %50 = arith.mulf %45, %49 : vector<8x32xf32>
    %51 = tpu.concatenate %31, %10 in 1 : vector<8x32xf32>, vector<8x32xf32> -> vector<8x64xf32>
    %52 = arith.truncf %51 : vector<8x64xf32> to vector<8x64xbf16>
    %cst_19 = arith.constant dense<0.000000e+00> : vector<8x128xf32>
    %53 = tpu.matmul %52, %7, %cst_19 {dimension_numbers = #tpu.dot_dimension_numbers<[1], [0], [0], [1], [0, 0, 1, 1], [], []>} : vector<8x64xbf16>, vector<64x128xbf16>, vector<8x128xf32> -> vector<8x128xf32>
    %54 = vector.broadcast %8 : vector<1x128xf32> to vector<8x128xf32>
    %55 = arith.addf %53, %54 : vector<8x128xf32>
    %56 = arith.negf %55 : vector<8x128xf32>
    %57 = math.exp %56 : vector<8x128xf32>
    %cst_20 = arith.constant 1.000000e+00 : f32
    %58 = vector.broadcast %cst_20 : f32 to vector<8x128xf32>
    %59 = arith.addf %58, %57 : vector<8x128xf32>
    %60 = arith.divf %58, %59 : vector<8x128xf32>
    %61 = math.tanh %55 : vector<8x128xf32>
    %62 = vector.extract_strided_slice %60 {offsets = [0, 0], sizes = [8, 32], strides = [1, 1]} : vector<8x128xf32> to vector<8x32xf32>
    %63 = vector.extract_strided_slice %60 {offsets = [0, 32], sizes = [8, 32], strides = [1, 1]} : vector<8x128xf32> to vector<8x32xf32>
    %64 = vector.extract_strided_slice %61 {offsets = [0, 64], sizes = [8, 32], strides = [1, 1]} : vector<8x128xf32> to vector<8x32xf32>
    %65 = vector.extract_strided_slice %60 {offsets = [0, 96], sizes = [8, 32], strides = [1, 1]} : vector<8x128xf32> to vector<8x32xf32>
    %66 = arith.mulf %63, %12 : vector<8x32xf32>
    %67 = arith.mulf %62, %64 : vector<8x32xf32>
    %68 = arith.addf %66, %67 : vector<8x32xf32>
    %69 = math.tanh %68 : vector<8x32xf32>
    %70 = arith.mulf %65, %69 : vector<8x32xf32>
    %71 = vector.extract_strided_slice %5 {offsets = [16, 0], sizes = [8, 128], strides = [1, 1]} : vector<64x128xf32> to vector<8x128xf32>
    %72 = arith.truncf %50 : vector<8x32xf32> to vector<8x32xbf16>
    %cst_21 = arith.constant dense<0.000000e+00> : vector<8x128xf32>
    %73 = tpu.matmul %72, %6, %cst_21 {dimension_numbers = #tpu.dot_dimension_numbers<[1], [0], [0], [1], [0, 0, 1, 1], [], []>} : vector<8x32xbf16>, vector<32x128xbf16>, vector<8x128xf32> -> vector<8x128xf32>
    %74 = arith.addf %71, %73 : vector<8x128xf32>
    %75 = arith.negf %74 : vector<8x128xf32>
    %76 = math.exp %75 : vector<8x128xf32>
    %cst_22 = arith.constant 1.000000e+00 : f32
    %77 = vector.broadcast %cst_22 : f32 to vector<8x128xf32>
    %78 = arith.addf %77, %76 : vector<8x128xf32>
    %79 = arith.divf %77, %78 : vector<8x128xf32>
    %80 = math.tanh %74 : vector<8x128xf32>
    %81 = vector.extract_strided_slice %79 {offsets = [0, 0], sizes = [8, 32], strides = [1, 1]} : vector<8x128xf32> to vector<8x32xf32>
    %82 = vector.extract_strided_slice %79 {offsets = [0, 32], sizes = [8, 32], strides = [1, 1]} : vector<8x128xf32> to vector<8x32xf32>
    %83 = vector.extract_strided_slice %80 {offsets = [0, 64], sizes = [8, 32], strides = [1, 1]} : vector<8x128xf32> to vector<8x32xf32>
    %84 = vector.extract_strided_slice %79 {offsets = [0, 96], sizes = [8, 32], strides = [1, 1]} : vector<8x128xf32> to vector<8x32xf32>
    %85 = arith.mulf %82, %48 : vector<8x32xf32>
    %86 = arith.mulf %81, %83 : vector<8x32xf32>
    %87 = arith.addf %85, %86 : vector<8x32xf32>
    %88 = math.tanh %87 : vector<8x32xf32>
    %89 = arith.mulf %84, %88 : vector<8x32xf32>
    %90 = tpu.concatenate %50, %70 in 1 : vector<8x32xf32>, vector<8x32xf32> -> vector<8x64xf32>
    %91 = arith.truncf %90 : vector<8x64xf32> to vector<8x64xbf16>
    %cst_23 = arith.constant dense<0.000000e+00> : vector<8x128xf32>
    %92 = tpu.matmul %91, %7, %cst_23 {dimension_numbers = #tpu.dot_dimension_numbers<[1], [0], [0], [1], [0, 0, 1, 1], [], []>} : vector<8x64xbf16>, vector<64x128xbf16>, vector<8x128xf32> -> vector<8x128xf32>
    %93 = vector.broadcast %8 : vector<1x128xf32> to vector<8x128xf32>
    %94 = arith.addf %92, %93 : vector<8x128xf32>
    %95 = arith.negf %94 : vector<8x128xf32>
    %96 = math.exp %95 : vector<8x128xf32>
    %cst_24 = arith.constant 1.000000e+00 : f32
    %97 = vector.broadcast %cst_24 : f32 to vector<8x128xf32>
    %98 = arith.addf %97, %96 : vector<8x128xf32>
    %99 = arith.divf %97, %98 : vector<8x128xf32>
    %100 = math.tanh %94 : vector<8x128xf32>
    %101 = vector.extract_strided_slice %99 {offsets = [0, 0], sizes = [8, 32], strides = [1, 1]} : vector<8x128xf32> to vector<8x32xf32>
    %102 = vector.extract_strided_slice %99 {offsets = [0, 32], sizes = [8, 32], strides = [1, 1]} : vector<8x128xf32> to vector<8x32xf32>
    %103 = vector.extract_strided_slice %100 {offsets = [0, 64], sizes = [8, 32], strides = [1, 1]} : vector<8x128xf32> to vector<8x32xf32>
    %104 = vector.extract_strided_slice %99 {offsets = [0, 96], sizes = [8, 32], strides = [1, 1]} : vector<8x128xf32> to vector<8x32xf32>
    %105 = arith.mulf %102, %68 : vector<8x32xf32>
    %106 = arith.mulf %101, %103 : vector<8x32xf32>
    %107 = arith.addf %105, %106 : vector<8x32xf32>
    %108 = math.tanh %107 : vector<8x32xf32>
    %109 = arith.mulf %104, %108 : vector<8x32xf32>
    %110 = vector.extract_strided_slice %5 {offsets = [24, 0], sizes = [8, 128], strides = [1, 1]} : vector<64x128xf32> to vector<8x128xf32>
    %111 = arith.truncf %89 : vector<8x32xf32> to vector<8x32xbf16>
    %cst_25 = arith.constant dense<0.000000e+00> : vector<8x128xf32>
    %112 = tpu.matmul %111, %6, %cst_25 {dimension_numbers = #tpu.dot_dimension_numbers<[1], [0], [0], [1], [0, 0, 1, 1], [], []>} : vector<8x32xbf16>, vector<32x128xbf16>, vector<8x128xf32> -> vector<8x128xf32>
    %113 = arith.addf %110, %112 : vector<8x128xf32>
    %114 = arith.negf %113 : vector<8x128xf32>
    %115 = math.exp %114 : vector<8x128xf32>
    %cst_26 = arith.constant 1.000000e+00 : f32
    %116 = vector.broadcast %cst_26 : f32 to vector<8x128xf32>
    %117 = arith.addf %116, %115 : vector<8x128xf32>
    %118 = arith.divf %116, %117 : vector<8x128xf32>
    %119 = math.tanh %113 : vector<8x128xf32>
    %120 = vector.extract_strided_slice %118 {offsets = [0, 0], sizes = [8, 32], strides = [1, 1]} : vector<8x128xf32> to vector<8x32xf32>
    %121 = vector.extract_strided_slice %118 {offsets = [0, 32], sizes = [8, 32], strides = [1, 1]} : vector<8x128xf32> to vector<8x32xf32>
    %122 = vector.extract_strided_slice %119 {offsets = [0, 64], sizes = [8, 32], strides = [1, 1]} : vector<8x128xf32> to vector<8x32xf32>
    %123 = vector.extract_strided_slice %118 {offsets = [0, 96], sizes = [8, 32], strides = [1, 1]} : vector<8x128xf32> to vector<8x32xf32>
    %124 = arith.mulf %121, %87 : vector<8x32xf32>
    %125 = arith.mulf %120, %122 : vector<8x32xf32>
    %126 = arith.addf %124, %125 : vector<8x32xf32>
    %127 = math.tanh %126 : vector<8x32xf32>
    %128 = arith.mulf %123, %127 : vector<8x32xf32>
    %129 = tpu.concatenate %89, %109 in 1 : vector<8x32xf32>, vector<8x32xf32> -> vector<8x64xf32>
    %130 = arith.truncf %129 : vector<8x64xf32> to vector<8x64xbf16>
    %cst_27 = arith.constant dense<0.000000e+00> : vector<8x128xf32>
    %131 = tpu.matmul %130, %7, %cst_27 {dimension_numbers = #tpu.dot_dimension_numbers<[1], [0], [0], [1], [0, 0, 1, 1], [], []>} : vector<8x64xbf16>, vector<64x128xbf16>, vector<8x128xf32> -> vector<8x128xf32>
    %132 = vector.broadcast %8 : vector<1x128xf32> to vector<8x128xf32>
    %133 = arith.addf %131, %132 : vector<8x128xf32>
    %134 = arith.negf %133 : vector<8x128xf32>
    %135 = math.exp %134 : vector<8x128xf32>
    %cst_28 = arith.constant 1.000000e+00 : f32
    %136 = vector.broadcast %cst_28 : f32 to vector<8x128xf32>
    %137 = arith.addf %136, %135 : vector<8x128xf32>
    %138 = arith.divf %136, %137 : vector<8x128xf32>
    %139 = math.tanh %133 : vector<8x128xf32>
    %140 = vector.extract_strided_slice %138 {offsets = [0, 0], sizes = [8, 32], strides = [1, 1]} : vector<8x128xf32> to vector<8x32xf32>
    %141 = vector.extract_strided_slice %138 {offsets = [0, 32], sizes = [8, 32], strides = [1, 1]} : vector<8x128xf32> to vector<8x32xf32>
    %142 = vector.extract_strided_slice %139 {offsets = [0, 64], sizes = [8, 32], strides = [1, 1]} : vector<8x128xf32> to vector<8x32xf32>
    %143 = vector.extract_strided_slice %138 {offsets = [0, 96], sizes = [8, 32], strides = [1, 1]} : vector<8x128xf32> to vector<8x32xf32>
    %144 = arith.mulf %141, %107 : vector<8x32xf32>
    %145 = arith.mulf %140, %142 : vector<8x32xf32>
    %146 = arith.addf %144, %145 : vector<8x32xf32>
    %147 = math.tanh %146 : vector<8x32xf32>
    %148 = arith.mulf %143, %147 : vector<8x32xf32>
    %149 = vector.extract_strided_slice %5 {offsets = [32, 0], sizes = [8, 128], strides = [1, 1]} : vector<64x128xf32> to vector<8x128xf32>
    %150 = arith.truncf %128 : vector<8x32xf32> to vector<8x32xbf16>
    %cst_29 = arith.constant dense<0.000000e+00> : vector<8x128xf32>
    %151 = tpu.matmul %150, %6, %cst_29 {dimension_numbers = #tpu.dot_dimension_numbers<[1], [0], [0], [1], [0, 0, 1, 1], [], []>} : vector<8x32xbf16>, vector<32x128xbf16>, vector<8x128xf32> -> vector<8x128xf32>
    %152 = arith.addf %149, %151 : vector<8x128xf32>
    %153 = arith.negf %152 : vector<8x128xf32>
    %154 = math.exp %153 : vector<8x128xf32>
    %cst_30 = arith.constant 1.000000e+00 : f32
    %155 = vector.broadcast %cst_30 : f32 to vector<8x128xf32>
    %156 = arith.addf %155, %154 : vector<8x128xf32>
    %157 = arith.divf %155, %156 : vector<8x128xf32>
    %158 = math.tanh %152 : vector<8x128xf32>
    %159 = vector.extract_strided_slice %157 {offsets = [0, 0], sizes = [8, 32], strides = [1, 1]} : vector<8x128xf32> to vector<8x32xf32>
    %160 = vector.extract_strided_slice %157 {offsets = [0, 32], sizes = [8, 32], strides = [1, 1]} : vector<8x128xf32> to vector<8x32xf32>
    %161 = vector.extract_strided_slice %158 {offsets = [0, 64], sizes = [8, 32], strides = [1, 1]} : vector<8x128xf32> to vector<8x32xf32>
    %162 = vector.extract_strided_slice %157 {offsets = [0, 96], sizes = [8, 32], strides = [1, 1]} : vector<8x128xf32> to vector<8x32xf32>
    %163 = arith.mulf %160, %126 : vector<8x32xf32>
    %164 = arith.mulf %159, %161 : vector<8x32xf32>
    %165 = arith.addf %163, %164 : vector<8x32xf32>
    %166 = math.tanh %165 : vector<8x32xf32>
    %167 = arith.mulf %162, %166 : vector<8x32xf32>
    %168 = tpu.concatenate %128, %148 in 1 : vector<8x32xf32>, vector<8x32xf32> -> vector<8x64xf32>
    %169 = arith.truncf %168 : vector<8x64xf32> to vector<8x64xbf16>
    %cst_31 = arith.constant dense<0.000000e+00> : vector<8x128xf32>
    %170 = tpu.matmul %169, %7, %cst_31 {dimension_numbers = #tpu.dot_dimension_numbers<[1], [0], [0], [1], [0, 0, 1, 1], [], []>} : vector<8x64xbf16>, vector<64x128xbf16>, vector<8x128xf32> -> vector<8x128xf32>
    %171 = vector.broadcast %8 : vector<1x128xf32> to vector<8x128xf32>
    %172 = arith.addf %170, %171 : vector<8x128xf32>
    %173 = arith.negf %172 : vector<8x128xf32>
    %174 = math.exp %173 : vector<8x128xf32>
    %cst_32 = arith.constant 1.000000e+00 : f32
    %175 = vector.broadcast %cst_32 : f32 to vector<8x128xf32>
    %176 = arith.addf %175, %174 : vector<8x128xf32>
    %177 = arith.divf %175, %176 : vector<8x128xf32>
    %178 = math.tanh %172 : vector<8x128xf32>
    %179 = vector.extract_strided_slice %177 {offsets = [0, 0], sizes = [8, 32], strides = [1, 1]} : vector<8x128xf32> to vector<8x32xf32>
    %180 = vector.extract_strided_slice %177 {offsets = [0, 32], sizes = [8, 32], strides = [1, 1]} : vector<8x128xf32> to vector<8x32xf32>
    %181 = vector.extract_strided_slice %178 {offsets = [0, 64], sizes = [8, 32], strides = [1, 1]} : vector<8x128xf32> to vector<8x32xf32>
    %182 = vector.extract_strided_slice %177 {offsets = [0, 96], sizes = [8, 32], strides = [1, 1]} : vector<8x128xf32> to vector<8x32xf32>
    %183 = arith.mulf %180, %146 : vector<8x32xf32>
    %184 = arith.mulf %179, %181 : vector<8x32xf32>
    %185 = arith.addf %183, %184 : vector<8x32xf32>
    %186 = math.tanh %185 : vector<8x32xf32>
    %187 = arith.mulf %182, %186 : vector<8x32xf32>
    %188 = vector.extract_strided_slice %5 {offsets = [40, 0], sizes = [8, 128], strides = [1, 1]} : vector<64x128xf32> to vector<8x128xf32>
    %189 = arith.truncf %167 : vector<8x32xf32> to vector<8x32xbf16>
    %cst_33 = arith.constant dense<0.000000e+00> : vector<8x128xf32>
    %190 = tpu.matmul %189, %6, %cst_33 {dimension_numbers = #tpu.dot_dimension_numbers<[1], [0], [0], [1], [0, 0, 1, 1], [], []>} : vector<8x32xbf16>, vector<32x128xbf16>, vector<8x128xf32> -> vector<8x128xf32>
    %191 = arith.addf %188, %190 : vector<8x128xf32>
    %192 = arith.negf %191 : vector<8x128xf32>
    %193 = math.exp %192 : vector<8x128xf32>
    %cst_34 = arith.constant 1.000000e+00 : f32
    %194 = vector.broadcast %cst_34 : f32 to vector<8x128xf32>
    %195 = arith.addf %194, %193 : vector<8x128xf32>
    %196 = arith.divf %194, %195 : vector<8x128xf32>
    %197 = math.tanh %191 : vector<8x128xf32>
    %198 = vector.extract_strided_slice %196 {offsets = [0, 0], sizes = [8, 32], strides = [1, 1]} : vector<8x128xf32> to vector<8x32xf32>
    %199 = vector.extract_strided_slice %196 {offsets = [0, 32], sizes = [8, 32], strides = [1, 1]} : vector<8x128xf32> to vector<8x32xf32>
    %200 = vector.extract_strided_slice %197 {offsets = [0, 64], sizes = [8, 32], strides = [1, 1]} : vector<8x128xf32> to vector<8x32xf32>
    %201 = vector.extract_strided_slice %196 {offsets = [0, 96], sizes = [8, 32], strides = [1, 1]} : vector<8x128xf32> to vector<8x32xf32>
    %202 = arith.mulf %199, %165 : vector<8x32xf32>
    %203 = arith.mulf %198, %200 : vector<8x32xf32>
    %204 = arith.addf %202, %203 : vector<8x32xf32>
    %205 = math.tanh %204 : vector<8x32xf32>
    %206 = arith.mulf %201, %205 : vector<8x32xf32>
    %207 = tpu.concatenate %167, %187 in 1 : vector<8x32xf32>, vector<8x32xf32> -> vector<8x64xf32>
    %208 = arith.truncf %207 : vector<8x64xf32> to vector<8x64xbf16>
    %cst_35 = arith.constant dense<0.000000e+00> : vector<8x128xf32>
    %209 = tpu.matmul %208, %7, %cst_35 {dimension_numbers = #tpu.dot_dimension_numbers<[1], [0], [0], [1], [0, 0, 1, 1], [], []>} : vector<8x64xbf16>, vector<64x128xbf16>, vector<8x128xf32> -> vector<8x128xf32>
    %210 = vector.broadcast %8 : vector<1x128xf32> to vector<8x128xf32>
    %211 = arith.addf %209, %210 : vector<8x128xf32>
    %212 = arith.negf %211 : vector<8x128xf32>
    %213 = math.exp %212 : vector<8x128xf32>
    %cst_36 = arith.constant 1.000000e+00 : f32
    %214 = vector.broadcast %cst_36 : f32 to vector<8x128xf32>
    %215 = arith.addf %214, %213 : vector<8x128xf32>
    %216 = arith.divf %214, %215 : vector<8x128xf32>
    %217 = math.tanh %211 : vector<8x128xf32>
    %218 = vector.extract_strided_slice %216 {offsets = [0, 0], sizes = [8, 32], strides = [1, 1]} : vector<8x128xf32> to vector<8x32xf32>
    %219 = vector.extract_strided_slice %216 {offsets = [0, 32], sizes = [8, 32], strides = [1, 1]} : vector<8x128xf32> to vector<8x32xf32>
    %220 = vector.extract_strided_slice %217 {offsets = [0, 64], sizes = [8, 32], strides = [1, 1]} : vector<8x128xf32> to vector<8x32xf32>
    %221 = vector.extract_strided_slice %216 {offsets = [0, 96], sizes = [8, 32], strides = [1, 1]} : vector<8x128xf32> to vector<8x32xf32>
    %222 = arith.mulf %219, %185 : vector<8x32xf32>
    %223 = arith.mulf %218, %220 : vector<8x32xf32>
    %224 = arith.addf %222, %223 : vector<8x32xf32>
    %225 = math.tanh %224 : vector<8x32xf32>
    %226 = arith.mulf %221, %225 : vector<8x32xf32>
    %227 = vector.extract_strided_slice %5 {offsets = [48, 0], sizes = [8, 128], strides = [1, 1]} : vector<64x128xf32> to vector<8x128xf32>
    %228 = arith.truncf %206 : vector<8x32xf32> to vector<8x32xbf16>
    %cst_37 = arith.constant dense<0.000000e+00> : vector<8x128xf32>
    %229 = tpu.matmul %228, %6, %cst_37 {dimension_numbers = #tpu.dot_dimension_numbers<[1], [0], [0], [1], [0, 0, 1, 1], [], []>} : vector<8x32xbf16>, vector<32x128xbf16>, vector<8x128xf32> -> vector<8x128xf32>
    %230 = arith.addf %227, %229 : vector<8x128xf32>
    %231 = arith.negf %230 : vector<8x128xf32>
    %232 = math.exp %231 : vector<8x128xf32>
    %cst_38 = arith.constant 1.000000e+00 : f32
    %233 = vector.broadcast %cst_38 : f32 to vector<8x128xf32>
    %234 = arith.addf %233, %232 : vector<8x128xf32>
    %235 = arith.divf %233, %234 : vector<8x128xf32>
    %236 = math.tanh %230 : vector<8x128xf32>
    %237 = vector.extract_strided_slice %235 {offsets = [0, 0], sizes = [8, 32], strides = [1, 1]} : vector<8x128xf32> to vector<8x32xf32>
    %238 = vector.extract_strided_slice %235 {offsets = [0, 32], sizes = [8, 32], strides = [1, 1]} : vector<8x128xf32> to vector<8x32xf32>
    %239 = vector.extract_strided_slice %236 {offsets = [0, 64], sizes = [8, 32], strides = [1, 1]} : vector<8x128xf32> to vector<8x32xf32>
    %240 = vector.extract_strided_slice %235 {offsets = [0, 96], sizes = [8, 32], strides = [1, 1]} : vector<8x128xf32> to vector<8x32xf32>
    %241 = arith.mulf %238, %204 : vector<8x32xf32>
    %242 = arith.mulf %237, %239 : vector<8x32xf32>
    %243 = arith.addf %241, %242 : vector<8x32xf32>
    %244 = math.tanh %243 : vector<8x32xf32>
    %245 = arith.mulf %240, %244 : vector<8x32xf32>
    %246 = tpu.concatenate %206, %226 in 1 : vector<8x32xf32>, vector<8x32xf32> -> vector<8x64xf32>
    %247 = arith.truncf %246 : vector<8x64xf32> to vector<8x64xbf16>
    %cst_39 = arith.constant dense<0.000000e+00> : vector<8x128xf32>
    %248 = tpu.matmul %247, %7, %cst_39 {dimension_numbers = #tpu.dot_dimension_numbers<[1], [0], [0], [1], [0, 0, 1, 1], [], []>} : vector<8x64xbf16>, vector<64x128xbf16>, vector<8x128xf32> -> vector<8x128xf32>
    %249 = vector.broadcast %8 : vector<1x128xf32> to vector<8x128xf32>
    %250 = arith.addf %248, %249 : vector<8x128xf32>
    %251 = arith.negf %250 : vector<8x128xf32>
    %252 = math.exp %251 : vector<8x128xf32>
    %cst_40 = arith.constant 1.000000e+00 : f32
    %253 = vector.broadcast %cst_40 : f32 to vector<8x128xf32>
    %254 = arith.addf %253, %252 : vector<8x128xf32>
    %255 = arith.divf %253, %254 : vector<8x128xf32>
    %256 = math.tanh %250 : vector<8x128xf32>
    %257 = vector.extract_strided_slice %255 {offsets = [0, 0], sizes = [8, 32], strides = [1, 1]} : vector<8x128xf32> to vector<8x32xf32>
    %258 = vector.extract_strided_slice %255 {offsets = [0, 32], sizes = [8, 32], strides = [1, 1]} : vector<8x128xf32> to vector<8x32xf32>
    %259 = vector.extract_strided_slice %256 {offsets = [0, 64], sizes = [8, 32], strides = [1, 1]} : vector<8x128xf32> to vector<8x32xf32>
    %260 = vector.extract_strided_slice %255 {offsets = [0, 96], sizes = [8, 32], strides = [1, 1]} : vector<8x128xf32> to vector<8x32xf32>
    %261 = arith.mulf %258, %224 : vector<8x32xf32>
    %262 = arith.mulf %257, %259 : vector<8x32xf32>
    %263 = arith.addf %261, %262 : vector<8x32xf32>
    %264 = math.tanh %263 : vector<8x32xf32>
    %265 = arith.mulf %260, %264 : vector<8x32xf32>
    %266 = vector.extract_strided_slice %5 {offsets = [56, 0], sizes = [8, 128], strides = [1, 1]} : vector<64x128xf32> to vector<8x128xf32>
    %267 = arith.truncf %245 : vector<8x32xf32> to vector<8x32xbf16>
    %cst_41 = arith.constant dense<0.000000e+00> : vector<8x128xf32>
    %268 = tpu.matmul %267, %6, %cst_41 {dimension_numbers = #tpu.dot_dimension_numbers<[1], [0], [0], [1], [0, 0, 1, 1], [], []>} : vector<8x32xbf16>, vector<32x128xbf16>, vector<8x128xf32> -> vector<8x128xf32>
    %269 = arith.addf %266, %268 : vector<8x128xf32>
    %270 = arith.negf %269 : vector<8x128xf32>
    %271 = math.exp %270 : vector<8x128xf32>
    %cst_42 = arith.constant 1.000000e+00 : f32
    %272 = vector.broadcast %cst_42 : f32 to vector<8x128xf32>
    %273 = arith.addf %272, %271 : vector<8x128xf32>
    %274 = arith.divf %272, %273 : vector<8x128xf32>
    %275 = math.tanh %269 : vector<8x128xf32>
    %276 = vector.extract_strided_slice %274 {offsets = [0, 0], sizes = [8, 32], strides = [1, 1]} : vector<8x128xf32> to vector<8x32xf32>
    %277 = vector.extract_strided_slice %274 {offsets = [0, 32], sizes = [8, 32], strides = [1, 1]} : vector<8x128xf32> to vector<8x32xf32>
    %278 = vector.extract_strided_slice %275 {offsets = [0, 64], sizes = [8, 32], strides = [1, 1]} : vector<8x128xf32> to vector<8x32xf32>
    %279 = vector.extract_strided_slice %274 {offsets = [0, 96], sizes = [8, 32], strides = [1, 1]} : vector<8x128xf32> to vector<8x32xf32>
    %280 = arith.mulf %277, %243 : vector<8x32xf32>
    %281 = arith.mulf %276, %278 : vector<8x32xf32>
    %282 = arith.addf %280, %281 : vector<8x32xf32>
    %283 = math.tanh %282 : vector<8x32xf32>
    %284 = arith.mulf %279, %283 : vector<8x32xf32>
    %285 = tpu.concatenate %245, %265 in 1 : vector<8x32xf32>, vector<8x32xf32> -> vector<8x64xf32>
    %286 = arith.truncf %285 : vector<8x64xf32> to vector<8x64xbf16>
    %cst_43 = arith.constant dense<0.000000e+00> : vector<8x128xf32>
    %287 = tpu.matmul %286, %7, %cst_43 {dimension_numbers = #tpu.dot_dimension_numbers<[1], [0], [0], [1], [0, 0, 1, 1], [], []>} : vector<8x64xbf16>, vector<64x128xbf16>, vector<8x128xf32> -> vector<8x128xf32>
    %288 = vector.broadcast %8 : vector<1x128xf32> to vector<8x128xf32>
    %289 = arith.addf %287, %288 : vector<8x128xf32>
    %290 = arith.negf %289 : vector<8x128xf32>
    %291 = math.exp %290 : vector<8x128xf32>
    %cst_44 = arith.constant 1.000000e+00 : f32
    %292 = vector.broadcast %cst_44 : f32 to vector<8x128xf32>
    %293 = arith.addf %292, %291 : vector<8x128xf32>
    %294 = arith.divf %292, %293 : vector<8x128xf32>
    %295 = math.tanh %289 : vector<8x128xf32>
    %296 = vector.extract_strided_slice %294 {offsets = [0, 0], sizes = [8, 32], strides = [1, 1]} : vector<8x128xf32> to vector<8x32xf32>
    %297 = vector.extract_strided_slice %294 {offsets = [0, 32], sizes = [8, 32], strides = [1, 1]} : vector<8x128xf32> to vector<8x32xf32>
    %298 = vector.extract_strided_slice %295 {offsets = [0, 64], sizes = [8, 32], strides = [1, 1]} : vector<8x128xf32> to vector<8x32xf32>
    %299 = vector.extract_strided_slice %294 {offsets = [0, 96], sizes = [8, 32], strides = [1, 1]} : vector<8x128xf32> to vector<8x32xf32>
    %300 = arith.mulf %297, %263 : vector<8x32xf32>
    %301 = arith.mulf %296, %298 : vector<8x32xf32>
    %302 = arith.addf %300, %301 : vector<8x32xf32>
    %303 = math.tanh %302 : vector<8x32xf32>
    %304 = arith.mulf %299, %303 : vector<8x32xf32>
    %305 = tpu.concatenate %284, %304 in 1 : vector<8x32xf32>, vector<8x32xf32> -> vector<8x64xf32>
    %306 = arith.truncf %305 : vector<8x64xf32> to vector<8x64xbf16>
    %cst_45 = arith.constant dense<0.000000e+00> : vector<8x128xf32>
    %307 = tpu.matmul %306, %7, %cst_45 {dimension_numbers = #tpu.dot_dimension_numbers<[1], [0], [0], [1], [0, 0, 1, 1], [], []>} : vector<8x64xbf16>, vector<64x128xbf16>, vector<8x128xf32> -> vector<8x128xf32>
    %308 = vector.broadcast %8 : vector<1x128xf32> to vector<8x128xf32>
    %309 = arith.addf %307, %308 : vector<8x128xf32>
    %310 = arith.negf %309 : vector<8x128xf32>
    %311 = math.exp %310 : vector<8x128xf32>
    %cst_46 = arith.constant 1.000000e+00 : f32
    %312 = vector.broadcast %cst_46 : f32 to vector<8x128xf32>
    %313 = arith.addf %312, %311 : vector<8x128xf32>
    %314 = arith.divf %312, %313 : vector<8x128xf32>
    %315 = math.tanh %309 : vector<8x128xf32>
    %316 = vector.extract_strided_slice %314 {offsets = [0, 0], sizes = [8, 32], strides = [1, 1]} : vector<8x128xf32> to vector<8x32xf32>
    %317 = vector.extract_strided_slice %314 {offsets = [0, 32], sizes = [8, 32], strides = [1, 1]} : vector<8x128xf32> to vector<8x32xf32>
    %318 = vector.extract_strided_slice %315 {offsets = [0, 64], sizes = [8, 32], strides = [1, 1]} : vector<8x128xf32> to vector<8x32xf32>
    %319 = vector.extract_strided_slice %314 {offsets = [0, 96], sizes = [8, 32], strides = [1, 1]} : vector<8x128xf32> to vector<8x32xf32>
    %320 = arith.mulf %317, %302 : vector<8x32xf32>
    %321 = arith.mulf %316, %318 : vector<8x32xf32>
    %322 = arith.addf %320, %321 : vector<8x32xf32>
    %323 = math.tanh %322 : vector<8x32xf32>
    %324 = arith.mulf %319, %323 : vector<8x32xf32>
    %325 = arith.truncf %324 : vector<8x32xf32> to vector<8x32xbf16>
    %c0_47 = arith.constant 0 : index
    %c0_48 = arith.constant 0 : index
    %326 = vector.load %arg6[%c0_47, %c0_48] : memref<32x256xbf16, #tpu.memory_space<vmem>>, vector<32x256xbf16>
    %cst_49 = arith.constant dense<0.000000e+00> : vector<8x256xf32>
    %327 = tpu.matmul %325, %326, %cst_49 {dimension_numbers = #tpu.dot_dimension_numbers<[1], [0], [0], [1], [0, 0, 1, 1], [], []>} : vector<8x32xbf16>, vector<32x256xbf16>, vector<8x256xf32> -> vector<8x256xf32>
    %c0_50 = arith.constant 0 : index
    %c0_51 = arith.constant 0 : index
    %328 = vector.load %arg7[%c0_50, %c0_51] : memref<1x256xf32, #tpu.memory_space<vmem>>, vector<1x256xf32>
    %329 = vector.broadcast %328 : vector<1x256xf32> to vector<8x256xf32>
    %330 = arith.addf %327, %329 : vector<8x256xf32>
    %cst_52 = arith.constant 0.000000e+00 : f32
    %331 = vector.broadcast %cst_52 : f32 to vector<8x256xf32>
    %332 = arith.maximumf %330, %331 : vector<8x256xf32>
    %333 = arith.truncf %332 : vector<8x256xf32> to vector<8x256xbf16>
    %c0_53 = arith.constant 0 : index
    %c0_54 = arith.constant 0 : index
    %334 = vector.load %arg8[%c0_53, %c0_54] : memref<256x128xbf16, #tpu.memory_space<vmem>>, vector<256x128xbf16>
    %cst_55 = arith.constant dense<0.000000e+00> : vector<8x128xf32>
    %335 = tpu.matmul %333, %334, %cst_55 {dimension_numbers = #tpu.dot_dimension_numbers<[1], [0], [0], [1], [0, 0, 1, 1], [], []>} : vector<8x256xbf16>, vector<256x128xbf16>, vector<8x128xf32> -> vector<8x128xf32>
    %c0_56 = arith.constant 0 : index
    %c0_57 = arith.constant 0 : index
    %336 = vector.load %arg9[%c0_56, %c0_57] : memref<1x128xf32, #tpu.memory_space<vmem>>, vector<1x128xf32>
    %337 = vector.broadcast %336 : vector<1x128xf32> to vector<8x128xf32>
    %338 = arith.addf %335, %337 : vector<8x128xf32>
    %c0_58 = arith.constant 0 : index
    %c0_59 = arith.constant 0 : index
    %339 = vector.load %arg10[%c0_58, %c0_59] : memref<8x128xf32, #tpu.memory_space<vmem>>, vector<8x128xf32>
    tpu.vector_store %arg10[%c0_58, %c0_59], %338 {strides = array<i32>} : memref<8x128xf32, #tpu.memory_space<vmem>>, vector<8x128xf32>,
    return
  }
}

</mosaic_0001>

<llo_original>
// kernel: lstm_forward.1
$region0: #{lstm_forward.1}
  #allocation0 [shape = 'u32[]', space=smem, size = 0x4, offset = 0x4, fixed_abs, tag = 'smem constant byte address 0x4 - core index']
  #allocation1 [shape = 'u32[144,128]{1,0:T(1,128)}', space=vmem, size = 0x12000, scoped, tag = 'internal scratch']
  %s0 = inlined_call_operand.vmem [shape: bf16[64,16], index: 0, kind: input, shape index: {}]
  %s1 = inlined_call_operand.vmem [shape: bf16[16,128], index: 1, kind: input, shape index: {}]
  %s2 = inlined_call_operand.vmem [shape: bf16[32,128], index: 2, kind: input, shape index: {}]
  %s3 = inlined_call_operand.vmem [shape: bf16[64,128], index: 3, kind: input, shape index: {}]
  %s4 = inlined_call_operand.vmem [shape: f32[1,128], index: 4, kind: input, shape index: {}]
  %s5 = inlined_call_operand.vmem [shape: f32[1,128], index: 5, kind: input, shape index: {}]
  %s6 = inlined_call_operand.vmem [shape: bf16[32,256], index: 6, kind: input, shape index: {}]
  %s7 = inlined_call_operand.vmem [shape: f32[1,256], index: 7, kind: input, shape index: {}]
  %s8 = inlined_call_operand.vmem [shape: bf16[256,128], index: 8, kind: input, shape index: {}]
  %s9 = inlined_call_operand.vmem [shape: f32[1,128], index: 9, kind: input, shape index: {}]
  %s10 = inlined_call_operand.vmem [shape: f32[8,128], index: 10, kind: output, shape index: {}]
  %s11 = sld [smem:[#allocation0]]
  $region50: #{lstm_forward.1} parent=0
    _
  %s13 = ssub.s32 1, %s11
  %s14 = scalar_select 0, %s13, %s11
  // Predicated region
  $region2: #{lstm_forward.1} parent=0 // pred_check
    _
  $region3: #{lstm_forward.1} parent=0 // pred_check_branch
    %16 = sbr.rel (0) target = $region5
  $region4: #{lstm_forward.1} parent=0 // pred_region
    _
  $region5: #{lstm_forward.1} parent=0 // pred_fallthru
    _
  // Predicated region
  $region6: #{lstm_forward.1} parent=0 // pred_check
    _
  $region7: #{lstm_forward.1} parent=0 // pred_check_branch
    %18 = sbr.rel (0) target = $region9
  $region8: #{lstm_forward.1} parent=0 // pred_region
    _
  $region9: #{lstm_forward.1} parent=0 // pred_fallthru
    _
  // Predicated region
  $region10: #{lstm_forward.1} parent=0 // pred_check
    _
  $region11: #{lstm_forward.1} parent=0 // pred_check_branch
    %20 = sbr.rel (0) target = $region13
  $region12: #{lstm_forward.1} parent=0 // pred_region
    _
  $region13: #{lstm_forward.1} parent=0 // pred_fallthru
    _
  // Predicated region
  $region14: #{lstm_forward.1} parent=0 // pred_check
    _
  $region15: #{lstm_forward.1} parent=0 // pred_check_branch
    %22 = sbr.rel (0) target = $region17
  $region16: #{lstm_forward.1} parent=0 // pred_region
    _
  $region17: #{lstm_forward.1} parent=0 // pred_fallthru
    _
  // Predicated region
  $region18: #{lstm_forward.1} parent=0 // pred_check
    _
  $region19: #{lstm_forward.1} parent=0 // pred_check_branch
    %24 = sbr.rel (0) target = $region21
  $region20: #{lstm_forward.1} parent=0 // pred_region
    _
  $region21: #{lstm_forward.1} parent=0 // pred_fallthru
    _
  // Predicated region
  $region22: #{lstm_forward.1} parent=0 // pred_check
    _
  $region23: #{lstm_forward.1} parent=0 // pred_check_branch
    %26 = sbr.rel (0) target = $region25
  $region24: #{lstm_forward.1} parent=0 // pred_region
    _
  $region25: #{lstm_forward.1} parent=0 // pred_fallthru
    _
  // Predicated region
  $region26: #{lstm_forward.1} parent=0 // pred_check
    _
  $region27: #{lstm_forward.1} parent=0 // pred_check_branch
    %28 = sbr.rel (0) target = $region29
  $region28: #{lstm_forward.1} parent=0 // pred_region
    _
  $region29: #{lstm_forward.1} parent=0 // pred_fallthru
    _
  // Predicated region
  $region30: #{lstm_forward.1} parent=0 // pred_check
    _
  $region31: #{lstm_forward.1} parent=0 // pred_check_branch
    %30 = sbr.rel (0) target = $region33
  $region32: #{lstm_forward.1} parent=0 // pred_region
    _
  $region33: #{lstm_forward.1} parent=0 // pred_fallthru
    _
  // Predicated region
  $region34: #{lstm_forward.1} parent=0 // pred_check
    _
  $region35: #{lstm_forward.1} parent=0 // pred_check_branch
    %32 = sbr.rel (0) target = $region37
  $region36: #{lstm_forward.1} parent=0 // pred_region
    _
  $region37: #{lstm_forward.1} parent=0 // pred_fallthru
    _
  // Predicated region
  $region38: #{lstm_forward.1} parent=0 // pred_check
    _
  $region39: #{lstm_forward.1} parent=0 // pred_check_branch
    %34 = sbr.rel (0) target = $region41
  $region40: #{lstm_forward.1} parent=0 // pred_region
    _
  $region41: #{lstm_forward.1} parent=0 // pred_fallthru
    _
  %v36 = vld [vmem:[%s0] sm:$0xf]
  %v37 = vld [vmem:[%s0 + $0x4] sm:$0xf]
  %v38 = vld [vmem:[%s0 + $0x8] sm:$0xf]
  %v39 = vld [vmem:[%s0 + $0xc] sm:$0xf]
  %v40 = vld [vmem:[%s0 + $0x10] sm:$0xf]
  %v41 = vld [vmem:[%s0 + $0x14] sm:$0xf]
  %v42 = vld [vmem:[%s0 + $0x18] sm:$0xf]
  %v43 = vld [vmem:[%s0 + $0x1c] sm:$0xf]
  %v44 = vld [vmem:[%s1] sm:$0xf]
  %v45 = vld [vmem:[%s1 + $0x4] sm:$0xf]
  %v46 = vld [vmem:[%s4] sm:$0x1]
  %v48 = vlaneseq
  %v49 = vshrl.u32 %v48, 7
  %v50 = vsub.s32 0, %v49
  %v51 = vrot.slane %v46, %v50
  %v61 = vunpack.c.l.b16 %v36
  %v62 = vunpack.c.l.b16 %v37
  %v63 = vunpack.c.l.b16 %v38
  %v64 = vunpack.c.l.b16 %v39
  %v65 = vunpack.c.l.b16 %v40
  %v66 = vunpack.c.l.b16 %v41
  %v67 = vunpack.c.l.b16 %v42
  %v68 = vunpack.c.l.b16 %v43
  %v69 = vpack.c.b16 %v62, %v61
  %v70 = vpack.c.b16 %v64, %v63
  %v71 = vpack.c.b16 %v66, %v65
  %v72 = vpack.c.b16 %v68, %v67
  %v75 = vunpack.c.l.b16 %v44
  %v76 = vunpack.c.l.b16 %v45
  %v77 = vpack.c.b16 %v76, %v75
  %vm79 = vcmask 130048
  %v81 = vsel %vm79, %v69, 0
  %v84 = vsel %vm79, %v70, 0
  %v87 = vsel %vm79, %v71, 0
  %v90 = vsel %vm79, %v72, 0
  %92 = vmatprep.subr.bf16.mxu0 0
  %93 = vmatpush1.bf16.msra.mxu0 %v77
  %94 = vmatprep.subr.bf16.mxu0 0
  %95 = vmatpush1.bf16.msra.mxu0 0
  %96 = vmatprep.subr.bf16.mxu0 0
  %97 = vmatpush1.bf16.msra.mxu0 0
  %98 = vmatprep.subr.bf16.mxu0 0
  %99 = vmatpush1.bf16.msra.mxu0 0
  %100 = vmatprep.subr.bf16.mxu0 0
  %101 = vmatpush1.bf16.msra.mxu0 0
  %102 = vmatprep.subr.bf16.mxu0 0
  %103 = vmatpush1.bf16.msra.mxu0 0
  %104 = vmatprep.subr.bf16.mxu0 0
  %105 = vmatpush1.bf16.msra.mxu0 0
  %106 = vmatprep.subr.bf16.mxu0 0
  %107 = vmatpush1.bf16.msra.mxu0 0
  %108 = vmatprep.subr.bf16.mxu0 0
  %109 = vmatpush1.bf16.msra.mxu0 0
  %110 = vmatprep.subr.bf16.mxu0 0
  %111 = vmatpush1.bf16.msra.mxu0 0
  %112 = vmatprep.subr.bf16.mxu0 0
  %113 = vmatpush1.bf16.msra.mxu0 0
  %114 = vmatprep.subr.bf16.mxu0 0
  %115 = vmatpush1.bf16.msra.mxu0 0
  %116 = vmatprep.subr.bf16.mxu0 0
  %117 = vmatpush1.bf16.msra.mxu0 0
  %118 = vmatprep.subr.bf16.mxu0 0
  %119 = vmatpush1.bf16.msra.mxu0 0
  %120 = vmatprep.subr.bf16.mxu0 0
  %121 = vmatpush1.bf16.msra.mxu0 0
  %122 = vmatprep.subr.bf16.mxu0 0
  %123 = vmatpush1.bf16.msra.mxu0 0
  %124 = vmatprep.mubr.bf16.mxu0 0
  %125 = vmatmul.mubr.bf16.gmra.mrb[0].mxu0 %v81
  %v126 = vpop.f32.mrb[0].mxu0
  %v127 = vadd.f32 %v51, %v126
  %v128 = vpop.f32.mrb[0].mxu0
  %v129 = vpop.f32.mrb[0].mxu0
  %v130 = vadd.f32 %v51, %v129
  %v131 = vpop.f32.mrb[0].mxu0
  %132 = vmatprep.mubr.bf16.mxu0 0
  %133 = vmatmul.mubr.bf16.gmra.mrb[0].mxu0 %v84
  %v134 = vpop.f32.mrb[0].mxu0
  %v135 = vadd.f32 %v51, %v134
  %v136 = vpop.f32.mrb[0].mxu0
  %v137 = vpop.f32.mrb[0].mxu0
  %v138 = vadd.f32 %v51, %v137
  %v139 = vpop.f32.mrb[0].mxu0
  %140 = vmatprep.mubr.bf16.mxu0 0
  %141 = vmatmul.mubr.bf16.gmra.mrb[0].mxu0 %v87
  %v142 = vpop.f32.mrb[0].mxu0
  %v143 = vadd.f32 %v51, %v142
  %v144 = vpop.f32.mrb[0].mxu0
  %v145 = vpop.f32.mrb[0].mxu0
  %v146 = vadd.f32 %v51, %v145
  %v147 = vpop.f32.mrb[0].mxu0
  %148 = vmatprep.mubr.bf16.mxu0 0
  %149 = vmatmul.mubr.bf16.gmra.mrb[0].mxu0 %v90
  %v150 = vpop.f32.mrb[0].mxu0
  %v151 = vadd.f32 %v51, %v150
  %v152 = vpop.f32.mrb[0].mxu0
  %v153 = vpop.f32.mrb[0].mxu0
  %v154 = vadd.f32 %v51, %v153
  %v155 = vpop.f32.mrb[0].mxu0
  %156 = vdwg.mxu0
  %v157 = vld [vmem:[%s2] sm:$0xf]
  %v158 = vld [vmem:[%s2 + $0x4] sm:$0xf]
  %v159 = vld [vmem:[%s2 + $0x8] sm:$0xf]
  %v160 = vld [vmem:[%s2 + $0xc] sm:$0xf]
  %v161 = vld [vmem:[%s3] sm:$0xf]
  %v162 = vld [vmem:[%s3 + $0x4] sm:$0xf]
  %v163 = vld [vmem:[%s3 + $0x8] sm:$0xf]
  %v164 = vld [vmem:[%s3 + $0xc] sm:$0xf]
  %v165 = vld [vmem:[%s3 + $0x10] sm:$0xf]
  %v166 = vld [vmem:[%s3 + $0x14] sm:$0xf]
  %v167 = vld [vmem:[%s3 + $0x18] sm:$0xf]
  %v168 = vld [vmem:[%s3 + $0x1c] sm:$0xf]
  %v169 = vld [vmem:[%s5] sm:$0x1]
  %v174 = vunpack.c.l.b16 %v157
  %v175 = vunpack.c.l.b16 %v158
  %v176 = vunpack.c.l.b16 %v159
  %v177 = vunpack.c.l.b16 %v160
  %v178 = vpack.c.b16 %v175, %v174
  %v179 = vpack.c.b16 %v177, %v176
  %vm182 = vcmask 261120
  %v184 = vsel %vm182, 0, 0
  %186 = vmatprep.subr.bf16.mxu0 0
  %187 = vmatpush1.bf16.msra.mxu0 %v178
  %188 = vmatprep.subr.bf16.mxu0 0
  %189 = vmatpush1.bf16.msra.mxu0 %v179
  %190 = vmatprep.subr.bf16.mxu0 0
  %191 = vmatpush1.bf16.msra.mxu0 0
  %192 = vmatprep.subr.bf16.mxu0 0
  %193 = vmatpush1.bf16.msra.mxu0 0
  %194 = vmatprep.subr.bf16.mxu0 0
  %195 = vmatpush1.bf16.msra.mxu0 0
  %196 = vmatprep.subr.bf16.mxu0 0
  %197 = vmatpush1.bf16.msra.mxu0 0
  %198 = vmatprep.subr.bf16.mxu0 0
  %199 = vmatpush1.bf16.msra.mxu0 0
  %200 = vmatprep.subr.bf16.mxu0 0
  %201 = vmatpush1.bf16.msra.mxu0 0
  %202 = vmatprep.subr.bf16.mxu0 0
  %203 = vmatpush1.bf16.msra.mxu0 0
  %204 = vmatprep.subr.bf16.mxu0 0
  %205 = vmatpush1.bf16.msra.mxu0 0
  %206 = vmatprep.subr.bf16.mxu0 0
  %207 = vmatpush1.bf16.msra.mxu0 0
  %208 = vmatprep.subr.bf16.mxu0 0
  %209 = vmatpush1.bf16.msra.mxu0 0
  %210 = vmatprep.subr.bf16.mxu0 0
  %211 = vmatpush1.bf16.msra.mxu0 0
  %212 = vmatprep.subr.bf16.mxu0 0
  %213 = vmatpush1.bf16.msra.mxu0 0
  %214 = vmatprep.subr.bf16.mxu0 0
  %215 = vmatpush1.bf16.msra.mxu0 0
  %216 = vmatprep.subr.bf16.mxu0 0
  %217 = vmatpush1.bf16.msra.mxu0 0
  %218 = vmatprep.mubr.bf16.mxu0 0
  %219 = vmatmul.mubr.bf16.gmra.mrb[0].mxu0 %v184
  %v220 = vpop.f32.mrb[0].mxu0
  %v221 = vadd.f32 0.0, %v220
  %v222 = vpop.f32.mrb[0].mxu0
  %v223 = vpop.f32.mrb[0].mxu0
  %v224 = vpop.f32.mrb[0].mxu0
  %225 = vdwg.mxu0
  %v226 = vadd.f32 %v127, %v221
  %v227 = vxor.u32 %v226, 2147483648
  %v228 = vmul.f32 %v227, 1.442695
  %v229 = vpow.pop %v228
  %v230 = vadd.f32 %v229, 1.0
  %v231 = vrcp.pop %v230
  %v232 = vmul.f32 1.0, %v231
  %v233 = vtanh.pop %v226
  %v234 = vmul.f32 %v232, 0.0
  %236 = vrot.lane.b32.xlu0 %v233, 64
  %v237 = vpop.permute.xlu0 %236
  %v239 = vmul.f32 %v232, %v237
  %241 = vrot.lane.b32.xlu0 %v239, 32
  %v242 = vpop.permute.xlu0 %241
  %v244 = vadd.f32 %v234, %v242
  %v245 = vtanh.pop %v244
  %247 = vrot.lane.b32.xlu0 %v245, 64
  %v248 = vpop.permute.xlu0 %247
  %v250 = vmul.f32 %v232, %v248
  %v251 = vpack.c.bf16 %v250, %v250
  %253 = vrot.lane.b32.xlu0 %v251, 32
  %v254 = vpop.permute.xlu0 %253
  %v256 = vsel %vm182, %v254, 0
  %258 = vmatprep.subr.bf16.mxu0 0
  %259 = vmatpush1.bf16.msra.mxu0 %v178
  %260 = vmatprep.subr.bf16.mxu0 0
  %261 = vmatpush1.bf16.msra.mxu0 %v179
  %262 = vmatprep.subr.bf16.mxu0 0
  %263 = vmatpush1.bf16.msra.mxu0 0
  %264 = vmatprep.subr.bf16.mxu0 0
  %265 = vmatpush1.bf16.msra.mxu0 0
  %266 = vmatprep.subr.bf16.mxu0 0
  %267 = vmatpush1.bf16.msra.mxu0 0
  %268 = vmatprep.subr.bf16.mxu0 0
  %269 = vmatpush1.bf16.msra.mxu0 0
  %270 = vmatprep.subr.bf16.mxu0 0
  %271 = vmatpush1.bf16.msra.mxu0 0
  %272 = vmatprep.subr.bf16.mxu0 0
  %273 = vmatpush1.bf16.msra.mxu0 0
  %274 = vmatprep.subr.bf16.mxu0 0
  %275 = vmatpush1.bf16.msra.mxu0 0
  %276 = vmatprep.subr.bf16.mxu0 0
  %277 = vmatpush1.bf16.msra.mxu0 0
  %278 = vmatprep.subr.bf16.mxu0 0
  %279 = vmatpush1.bf16.msra.mxu0 0
  %280 = vmatprep.subr.bf16.mxu0 0
  %281 = vmatpush1.bf16.msra.mxu0 0
  %282 = vmatprep.subr.bf16.mxu0 0
  %283 = vmatpush1.bf16.msra.mxu0 0
  %284 = vmatprep.subr.bf16.mxu0 0
  %285 = vmatpush1.bf16.msra.mxu0 0
  %286 = vmatprep.subr.bf16.mxu0 0
  %287 = vmatpush1.bf16.msra.mxu0 0
  %288 = vmatprep.subr.bf16.mxu0 0
  %289 = vmatpush1.bf16.msra.mxu0 0
  %290 = vmatprep.mubr.bf16.mxu0 0
  %291 = vmatmul.mubr.bf16.gmra.mrb[0].mxu0 %v256
  %v292 = vpop.f32.mrb[0].mxu0
  %v293 = vadd.f32 0.0, %v292
  %v294 = vpop.f32.mrb[0].mxu0
  %v295 = vpop.f32.mrb[0].mxu0
  %v296 = vpop.f32.mrb[0].mxu0
  %297 = vdwg.mxu0
  %v298 = vadd.f32 %v130, %v293
  %v299 = vxor.u32 %v298, 2147483648
  %v300 = vmul.f32 %v299, 1.442695
  %v301 = vpow.pop %v300
  %v302 = vadd.f32 %v301, 1.0
  %v303 = vrcp.pop %v302
  %v304 = vmul.f32 1.0, %v303
  %v305 = vtanh.pop %v298
  %v306 = vmul.f32 %v304, %v244
  %308 = vrot.lane.b32.xlu0 %v305, 64
  %v309 = vpop.permute.xlu0 %308
  %v311 = vmul.f32 %v304, %v309
  %313 = vrot.lane.b32.xlu0 %v311, 32
  %v314 = vpop.permute.xlu0 %313
  %v316 = vadd.f32 %v306, %v314
  %v317 = vtanh.pop %v316
  %319 = vrot.lane.b32.xlu0 %v317, 64
  %v320 = vpop.permute.xlu0 %319
  %v322 = vmul.f32 %v304, %v320
  %324 = vrot.lane.b32.xlu0 %v250, 32
  %v325 = vpop.permute.xlu0 %324
  %v327 = vsel %vm182, %v325, 0.0
  %v328 = vpack.c.bf16 %v327, %v327
  %v330 = vlaneseq
  %v331 = vshrl.u32 %v330, 7
  %v332 = vsub.s32 0, %v331
  %v333 = vrot.slane %v169, %v332
  %v343 = vunpack.c.l.b16 %v161
  %v344 = vunpack.c.l.b16 %v162
  %v345 = vunpack.c.l.b16 %v163
  %v346 = vunpack.c.l.b16 %v164
  %v347 = vunpack.c.l.b16 %v165
  %v348 = vunpack.c.l.b16 %v166
  %v349 = vunpack.c.l.b16 %v167
  %v350 = vunpack.c.l.b16 %v168
  %v351 = vpack.c.b16 %v344, %v343
  %v352 = vpack.c.b16 %v346, %v345
  %v353 = vpack.c.b16 %v348, %v347
  %v354 = vpack.c.b16 %v350, %v349
  %vm359 = vcmask 523264
  %v361 = vsel %vm359, %v328, 0
  %363 = vmatprep.subr.bf16.mxu0 0
  %364 = vmatpush1.bf16.msra.mxu0 %v351
  %365 = vmatprep.subr.bf16.mxu0 0
  %366 = vmatpush1.bf16.msra.mxu0 %v352
  %367 = vmatprep.subr.bf16.mxu0 0
  %368 = vmatpush1.bf16.msra.mxu0 %v353
  %369 = vmatprep.subr.bf16.mxu0 0
  %370 = vmatpush1.bf16.msra.mxu0 %v354
  %371 = vmatprep.subr.bf16.mxu0 0
  %372 = vmatpush1.bf16.msra.mxu0 0
  %373 = vmatprep.subr.bf16.mxu0 0
  %374 = vmatpush1.bf16.msra.mxu0 0
  %375 = vmatprep.subr.bf16.mxu0 0
  %376 = vmatpush1.bf16.msra.mxu0 0
  %377 = vmatprep.subr.bf16.mxu0 0
  %378 = vmatpush1.bf16.msra.mxu0 0
  %379 = vmatprep.subr.bf16.mxu0 0
  %380 = vmatpush1.bf16.msra.mxu0 0
  %381 = vmatprep.subr.bf16.mxu0 0
  %382 = vmatpush1.bf16.msra.mxu0 0
  %383 = vmatprep.subr.bf16.mxu0 0
  %384 = vmatpush1.bf16.msra.mxu0 0
  %385 = vmatprep.subr.bf16.mxu0 0
  %386 = vmatpush1.bf16.msra.mxu0 0
  %387 = vmatprep.subr.bf16.mxu0 0
  %388 = vmatpush1.bf16.msra.mxu0 0
  %389 = vmatprep.subr.bf16.mxu0 0
  %390 = vmatpush1.bf16.msra.mxu0 0
  %391 = vmatprep.subr.bf16.mxu0 0
  %392 = vmatpush1.bf16.msra.mxu0 0
  %393 = vmatprep.subr.bf16.mxu0 0
  %394 = vmatpush1.bf16.msra.mxu0 0
  %395 = vmatprep.mubr.bf16.mxu0 0
  %396 = vmatmul.mubr.bf16.gmra.mrb[0].mxu0 %v361
  %v397 = vpop.f32.mrb[0].mxu0
  %v398 = vadd.f32 %v333, %v397
  %v399 = vpop.f32.mrb[0].mxu0
  %v400 = vpop.f32.mrb[0].mxu0
  %v401 = vpop.f32.mrb[0].mxu0
  %402 = vdwg.mxu0
  %v403 = vxor.u32 %v398, 2147483648
  %v404 = vmul.f32 %v403, 1.442695
  %v405 = vpow.pop %v404
  %v406 = vadd.f32 %v405, 1.0
  %v407 = vrcp.pop %v406
  %v408 = vmul.f32 1.0, %v407
  %v409 = vtanh.pop %v398
  %v410 = vmul.f32 %v408, 0.0
  %412 = vrot.lane.b32.xlu0 %v409, 64
  %v413 = vpop.permute.xlu0 %412
  %v415 = vmul.f32 %v408, %v413
  %417 = vrot.lane.b32.xlu0 %v415, 32
  %v418 = vpop.permute.xlu0 %417
  %v420 = vadd.f32 %v410, %v418
  %v421 = vtanh.pop %v420
  %423 = vrot.lane.b32.xlu0 %v421, 64
  %v424 = vpop.permute.xlu0 %423
  %v426 = vmul.f32 %v408, %v424
  %v427 = vpack.c.bf16 %v322, %v322
  %429 = vrot.lane.b32.xlu0 %v427, 32
  %v430 = vpop.permute.xlu0 %429
  %v432 = vsel %vm182, %v430, 0
  %434 = vmatprep.subr.bf16.mxu0 0
  %435 = vmatpush1.bf16.msra.mxu0 %v178
  %436 = vmatprep.subr.bf16.mxu0 0
  %437 = vmatpush1.bf16.msra.mxu0 %v179
  %438 = vmatprep.subr.bf16.mxu0 0
  %439 = vmatpush1.bf16.msra.mxu0 0
  %440 = vmatprep.subr.bf16.mxu0 0
  %441 = vmatpush1.bf16.msra.mxu0 0
  %442 = vmatprep.subr.bf16.mxu0 0
  %443 = vmatpush1.bf16.msra.mxu0 0
  %444 = vmatprep.subr.bf16.mxu0 0
  %445 = vmatpush1.bf16.msra.mxu0 0
  %446 = vmatprep.subr.bf16.mxu0 0
  %447 = vmatpush1.bf16.msra.mxu0 0
  %448 = vmatprep.subr.bf16.mxu0 0
  %449 = vmatpush1.bf16.msra.mxu0 0
  %450 = vmatprep.subr.bf16.mxu0 0
  %451 = vmatpush1.bf16.msra.mxu0 0
  %452 = vmatprep.subr.bf16.mxu0 0
  %453 = vmatpush1.bf16.msra.mxu0 0
  %454 = vmatprep.subr.bf16.mxu0 0
  %455 = vmatpush1.bf16.msra.mxu0 0
  %456 = vmatprep.subr.bf16.mxu0 0
  %457 = vmatpush1.bf16.msra.mxu0 0
  %458 = vmatprep.subr.bf16.mxu0 0
  %459 = vmatpush1.bf16.msra.mxu0 0
  %460 = vmatprep.subr.bf16.mxu0 0
  %461 = vmatpush1.bf16.msra.mxu0 0
  %462 = vmatprep.subr.bf16.mxu0 0
  %463 = vmatpush1.bf16.msra.mxu0 0
  %464 = vmatprep.subr.bf16.mxu0 0
  %465 = vmatpush1.bf16.msra.mxu0 0
  %466 = vmatprep.mubr.bf16.mxu0 0
  %467 = vmatmul.mubr.bf16.gmra.mrb[0].mxu0 %v432
  %v468 = vpop.f32.mrb[0].mxu0
  %v469 = vadd.f32 0.0, %v468
  %v470 = vpop.f32.mrb[0].mxu0
  %v471 = vpop.f32.mrb[0].mxu0
  %v472 = vpop.f32.mrb[0].mxu0
  %473 = vdwg.mxu0
  %v474 = vadd.f32 %v135, %v469
  %v475 = vxor.u32 %v474, 2147483648
  %v476 = vmul.f32 %v475, 1.442695
  %v477 = vpow.pop %v476
  %v478 = vadd.f32 %v477, 1.0
  %v479 = vrcp.pop %v478
  %v480 = vmul.f32 1.0, %v479
  %v481 = vtanh.pop %v474
  %v482 = vmul.f32 %v480, %v316
  %484 = vrot.lane.b32.xlu0 %v481, 64
  %v485 = vpop.permute.xlu0 %484
  %v487 = vmul.f32 %v480, %v485
  %489 = vrot.lane.b32.xlu0 %v487, 32
  %v490 = vpop.permute.xlu0 %489
  %v492 = vadd.f32 %v482, %v490
  %v493 = vtanh.pop %v492
  %495 = vrot.lane.b32.xlu0 %v493, 64
  %v496 = vpop.permute.xlu0 %495
  %v498 = vmul.f32 %v480, %v496
  %500 = vrot.lane.b32.xlu0 %v322, 32
  %v501 = vpop.permute.xlu0 %500
  %504 = vrot.lane.b32.xlu0 %v426, 64
  %v505 = vpop.permute.xlu0 %504
  %v507 = vsel %vm182, %v501, %v505
  %v508 = vpack.c.bf16 %v507, %v507
  %v510 = vsel %vm359, %v508, 0
  %512 = vmatprep.subr.bf16.mxu0 0
  %513 = vmatpush1.bf16.msra.mxu0 %v351
  %514 = vmatprep.subr.bf16.mxu0 0
  %515 = vmatpush1.bf16.msra.mxu0 %v352
  %516 = vmatprep.subr.bf16.mxu0 0
  %517 = vmatpush1.bf16.msra.mxu0 %v353
  %518 = vmatprep.subr.bf16.mxu0 0
  %519 = vmatpush1.bf16.msra.mxu0 %v354
  %520 = vmatprep.subr.bf16.mxu0 0
  %521 = vmatpush1.bf16.msra.mxu0 0
  %522 = vmatprep.subr.bf16.mxu0 0
  %523 = vmatpush1.bf16.msra.mxu0 0
  %524 = vmatprep.subr.bf16.mxu0 0
  %525 = vmatpush1.bf16.msra.mxu0 0
  %526 = vmatprep.subr.bf16.mxu0 0
  %527 = vmatpush1.bf16.msra.mxu0 0
  %528 = vmatprep.subr.bf16.mxu0 0
  %529 = vmatpush1.bf16.msra.mxu0 0
  %530 = vmatprep.subr.bf16.mxu0 0
  %531 = vmatpush1.bf16.msra.mxu0 0
  %532 = vmatprep.subr.bf16.mxu0 0
  %533 = vmatpush1.bf16.msra.mxu0 0
  %534 = vmatprep.subr.bf16.mxu0 0
  %535 = vmatpush1.bf16.msra.mxu0 0
  %536 = vmatprep.subr.bf16.mxu0 0
  %537 = vmatpush1.bf16.msra.mxu0 0
  %538 = vmatprep.subr.bf16.mxu0 0
  %539 = vmatpush1.bf16.msra.mxu0 0
  %540 = vmatprep.subr.bf16.mxu0 0
  %541 = vmatpush1.bf16.msra.mxu0 0
  %542 = vmatprep.subr.bf16.mxu0 0
  %543 = vmatpush1.bf16.msra.mxu0 0
  %544 = vmatprep.mubr.bf16.mxu0 0
  %545 = vmatmul.mubr.bf16.gmra.mrb[0].mxu0 %v510
  %v546 = vpop.f32.mrb[0].mxu0
  %v547 = vadd.f32 %v333, %v546
  %v548 = vpop.f32.mrb[0].mxu0
  %v549 = vpop.f32.mrb[0].mxu0
  %v550 = vpop.f32.mrb[0].mxu0
  %551 = vdwg.mxu0
  %v552 = vxor.u32 %v547, 2147483648
  %v553 = vmul.f32 %v552, 1.442695
  %v554 = vpow.pop %v553
  %v555 = vadd.f32 %v554, 1.0
  %v556 = vrcp.pop %v555
  %v557 = vmul.f32 1.0, %v556
  %v558 = vtanh.pop %v547
  %v559 = vmul.f32 %v557, %v420
  %561 = vrot.lane.b32.xlu0 %v558, 64
  %v562 = vpop.permute.xlu0 %561
  %v564 = vmul.f32 %v557, %v562
  %566 = vrot.lane.b32.xlu0 %v564, 32
  %v567 = vpop.permute.xlu0 %566
  %v569 = vadd.f32 %v559, %v567
  %v570 = vtanh.pop %v569
  %572 = vrot.lane.b32.xlu0 %v570, 64
  %v573 = vpop.permute.xlu0 %572
  %v575 = vmul.f32 %v557, %v573
  %v576 = vpack.c.bf16 %v498, %v498
  %578 = vrot.lane.b32.xlu0 %v576, 32
  %v579 = vpop.permute.xlu0 %578
  %v581 = vsel %vm182, %v579, 0
  %583 = vmatprep.subr.bf16.mxu0 0
  %584 = vmatpush1.bf16.msra.mxu0 %v178
  %585 = vmatprep.subr.bf16.mxu0 0
  %586 = vmatpush1.bf16.msra.mxu0 %v179
  %587 = vmatprep.subr.bf16.mxu0 0
  %588 = vmatpush1.bf16.msra.mxu0 0
  %589 = vmatprep.subr.bf16.mxu0 0
  %590 = vmatpush1.bf16.msra.mxu0 0
  %591 = vmatprep.subr.bf16.mxu0 0
  %592 = vmatpush1.bf16.msra.mxu0 0
  %593 = vmatprep.subr.bf16.mxu0 0
  %594 = vmatpush1.bf16.msra.mxu0 0
  %595 = vmatprep.subr.bf16.mxu0 0
  %596 = vmatpush1.bf16.msra.mxu0 0
  %597 = vmatprep.subr.bf16.mxu0 0
  %598 = vmatpush1.bf16.msra.mxu0 0
  %599 = vmatprep.subr.bf16.mxu0 0
  %600 = vmatpush1.bf16.msra.mxu0 0
  %601 = vmatprep.subr.bf16.mxu0 0
  %602 = vmatpush1.bf16.msra.mxu0 0
  %603 = vmatprep.subr.bf16.mxu0 0
  %604 = vmatpush1.bf16.msra.mxu0 0
  %605 = vmatprep.subr.bf16.mxu0 0
  %606 = vmatpush1.bf16.msra.mxu0 0
  %607 = vmatprep.subr.bf16.mxu0 0
  %608 = vmatpush1.bf16.msra.mxu0 0
  %609 = vmatprep.subr.bf16.mxu0 0
  %610 = vmatpush1.bf16.msra.mxu0 0
  %611 = vmatprep.subr.bf16.mxu0 0
  %612 = vmatpush1.bf16.msra.mxu0 0
  %613 = vmatprep.subr.bf16.mxu0 0
  %614 = vmatpush1.bf16.msra.mxu0 0
  %615 = vmatprep.mubr.bf16.mxu0 0
  %616 = vmatmul.mubr.bf16.gmra.mrb[0].mxu0 %v581
  %v617 = vpop.f32.mrb[0].mxu0
  %v618 = vadd.f32 0.0, %v617
  %v619 = vpop.f32.mrb[0].mxu0
  %v620 = vpop.f32.mrb[0].mxu0
  %v621 = vpop.f32.mrb[0].mxu0
  %622 = vdwg.mxu0
  %v623 = vadd.f32 %v138, %v618
  %v624 = vxor.u32 %v623, 2147483648
  %v625 = vmul.f32 %v624, 1.442695
  %v626 = vpow.pop %v625
  %v627 = vadd.f32 %v626, 1.0
  %v628 = vrcp.pop %v627
  %v629 = vmul.f32 1.0, %v628
  %v630 = vtanh.pop %v623
  %v631 = vmul.f32 %v629, %v492
  %633 = vrot.lane.b32.xlu0 %v630, 64
  %v634 = vpop.permute.xlu0 %633
  %v636 = vmul.f32 %v629, %v634
  %638 = vrot.lane.b32.xlu0 %v636, 32
  %v639 = vpop.permute.xlu0 %638
  %v641 = vadd.f32 %v631, %v639
  %v642 = vtanh.pop %v641
  %644 = vrot.lane.b32.xlu0 %v642, 64
  %v645 = vpop.permute.xlu0 %644
  %v647 = vmul.f32 %v629, %v645
  %649 = vrot.lane.b32.xlu0 %v498, 32
  %v650 = vpop.permute.xlu0 %649
  %653 = vrot.lane.b32.xlu0 %v575, 64
  %v654 = vpop.permute.xlu0 %653
  %v656 = vsel %vm182, %v650, %v654
  %v657 = vpack.c.bf16 %v656, %v656
  %v659 = vsel %vm359, %v657, 0
  %661 = vmatprep.subr.bf16.mxu0 0
  %662 = vmatpush1.bf16.msra.mxu0 %v351
  %663 = vmatprep.subr.bf16.mxu0 0
  %664 = vmatpush1.bf16.msra.mxu0 %v352
  %665 = vmatprep.subr.bf16.mxu0 0
  %666 = vmatpush1.bf16.msra.mxu0 %v353
  %667 = vmatprep.subr.bf16.mxu0 0
  %668 = vmatpush1.bf16.msra.mxu0 %v354
  %669 = vmatprep.subr.bf16.mxu0 0
  %670 = vmatpush1.bf16.msra.mxu0 0
  %671 = vmatprep.subr.bf16.mxu0 0
  %672 = vmatpush1.bf16.msra.mxu0 0
  %673 = vmatprep.subr.bf16.mxu0 0
  %674 = vmatpush1.bf16.msra.mxu0 0
  %675 = vmatprep.subr.bf16.mxu0 0
  %676 = vmatpush1.bf16.msra.mxu0 0
  %677 = vmatprep.subr.bf16.mxu0 0
  %678 = vmatpush1.bf16.msra.mxu0 0
  %679 = vmatprep.subr.bf16.mxu0 0
  %680 = vmatpush1.bf16.msra.mxu0 0
  %681 = vmatprep.subr.bf16.mxu0 0
  %682 = vmatpush1.bf16.msra.mxu0 0
  %683 = vmatprep.subr.bf16.mxu0 0
  %684 = vmatpush1.bf16.msra.mxu0 0
  %685 = vmatprep.subr.bf16.mxu0 0
  %686 = vmatpush1.bf16.msra.mxu0 0
  %687 = vmatprep.subr.bf16.mxu0 0
  %688 = vmatpush1.bf16.msra.mxu0 0
  %689 = vmatprep.subr.bf16.mxu0 0
  %690 = vmatpush1.bf16.msra.mxu0 0
  %691 = vmatprep.subr.bf16.mxu0 0
  %692 = vmatpush1.bf16.msra.mxu0 0
  %693 = vmatprep.mubr.bf16.mxu0 0
  %694 = vmatmul.mubr.bf16.gmra.mrb[0].mxu0 %v659
  %v695 = vpop.f32.mrb[0].mxu0
  %v696 = vadd.f32 %v333, %v695
  %v697 = vpop.f32.mrb[0].mxu0
  %v698 = vpop.f32.mrb[0].mxu0
  %v699 = vpop.f32.mrb[0].mxu0
  %700 = vdwg.mxu0
  %v701 = vxor.u32 %v696, 2147483648
  %v702 = vmul.f32 %v701, 1.442695
  %v703 = vpow.pop %v702
  %v704 = vadd.f32 %v703, 1.0
  %v705 = vrcp.pop %v704
  %v706 = vmul.f32 1.0, %v705
  %v707 = vtanh.pop %v696
  %v708 = vmul.f32 %v706, %v569
  %710 = vrot.lane.b32.xlu0 %v707, 64
  %v711 = vpop.permute.xlu0 %710
  %v713 = vmul.f32 %v706, %v711
  %715 = vrot.lane.b32.xlu0 %v713, 32
  %v716 = vpop.permute.xlu0 %715
  %v718 = vadd.f32 %v708, %v716
  %v719 = vtanh.pop %v718
  %721 = vrot.lane.b32.xlu0 %v719, 64
  %v722 = vpop.permute.xlu0 %721
  %v724 = vmul.f32 %v706, %v722
  %v725 = vpack.c.bf16 %v647, %v647
  %727 = vrot.lane.b32.xlu0 %v725, 32
  %v728 = vpop.permute.xlu0 %727
  %v730 = vsel %vm182, %v728, 0
  %732 = vmatprep.subr.bf16.mxu0 0
  %733 = vmatpush1.bf16.msra.mxu0 %v178
  %734 = vmatprep.subr.bf16.mxu0 0
  %735 = vmatpush1.bf16.msra.mxu0 %v179
  %736 = vmatprep.subr.bf16.mxu0 0
  %737 = vmatpush1.bf16.msra.mxu0 0
  %738 = vmatprep.subr.bf16.mxu0 0
  %739 = vmatpush1.bf16.msra.mxu0 0
  %740 = vmatprep.subr.bf16.mxu0 0
  %741 = vmatpush1.bf16.msra.mxu0 0
  %742 = vmatprep.subr.bf16.mxu0 0
  %743 = vmatpush1.bf16.msra.mxu0 0
  %744 = vmatprep.subr.bf16.mxu0 0
  %745 = vmatpush1.bf16.msra.mxu0 0
  %746 = vmatprep.subr.bf16.mxu0 0
  %747 = vmatpush1.bf16.msra.mxu0 0
  %748 = vmatprep.subr.bf16.mxu0 0
  %749 = vmatpush1.bf16.msra.mxu0 0
  %750 = vmatprep.subr.bf16.mxu0 0
  %751 = vmatpush1.bf16.msra.mxu0 0
  %752 = vmatprep.subr.bf16.mxu0 0
  %753 = vmatpush1.bf16.msra.mxu0 0
  %754 = vmatprep.subr.bf16.mxu0 0
  %755 = vmatpush1.bf16.msra.mxu0 0
  %756 = vmatprep.subr.bf16.mxu0 0
  %757 = vmatpush1.bf16.msra.mxu0 0
  %758 = vmatprep.subr.bf16.mxu0 0
  %759 = vmatpush1.bf16.msra.mxu0 0
  %760 = vmatprep.subr.bf16.mxu0 0
  %761 = vmatpush1.bf16.msra.mxu0 0
  %762 = vmatprep.subr.bf16.mxu0 0
  %763 = vmatpush1.bf16.msra.mxu0 0
  %764 = vmatprep.mubr.bf16.mxu0 0
  %765 = vmatmul.mubr.bf16.gmra.mrb[0].mxu0 %v730
  %v766 = vpop.f32.mrb[0].mxu0
  %v767 = vadd.f32 0.0, %v766
  %v768 = vpop.f32.mrb[0].mxu0
  %v769 = vpop.f32.mrb[0].mxu0
  %v770 = vpop.f32.mrb[0].mxu0
  %771 = vdwg.mxu0
  %v772 = vadd.f32 %v143, %v767
  %v773 = vxor.u32 %v772, 2147483648
  %v774 = vmul.f32 %v773, 1.442695
  %v775 = vpow.pop %v774
  %v776 = vadd.f32 %v775, 1.0
  %v777 = vrcp.pop %v776
  %v778 = vmul.f32 1.0, %v777
  %v779 = vtanh.pop %v772
  %v780 = vmul.f32 %v778, %v641
  %782 = vrot.lane.b32.xlu0 %v779, 64
  %v783 = vpop.permute.xlu0 %782
  %v785 = vmul.f32 %v778, %v783
  %787 = vrot.lane.b32.xlu0 %v785, 32
  %v788 = vpop.permute.xlu0 %787
  %v790 = vadd.f32 %v780, %v788
  %v791 = vtanh.pop %v790
  %793 = vrot.lane.b32.xlu0 %v791, 64
  %v794 = vpop.permute.xlu0 %793
  %v796 = vmul.f32 %v778, %v794
  %798 = vrot.lane.b32.xlu0 %v647, 32
  %v799 = vpop.permute.xlu0 %798
  %802 = vrot.lane.b32.xlu0 %v724, 64
  %v803 = vpop.permute.xlu0 %802
  %v805 = vsel %vm182, %v799, %v803
  %v806 = vpack.c.bf16 %v805, %v805
  %v808 = vsel %vm359, %v806, 0
  %810 = vmatprep.subr.bf16.mxu0 0
  %811 = vmatpush1.bf16.msra.mxu0 %v351
  %812 = vmatprep.subr.bf16.mxu0 0
  %813 = vmatpush1.bf16.msra.mxu0 %v352
  %814 = vmatprep.subr.bf16.mxu0 0
  %815 = vmatpush1.bf16.msra.mxu0 %v353
  %816 = vmatprep.subr.bf16.mxu0 0
  %817 = vmatpush1.bf16.msra.mxu0 %v354
  %818 = vmatprep.subr.bf16.mxu0 0
  %819 = vmatpush1.bf16.msra.mxu0 0
  %820 = vmatprep.subr.bf16.mxu0 0
  %821 = vmatpush1.bf16.msra.mxu0 0
  %822 = vmatprep.subr.bf16.mxu0 0
  %823 = vmatpush1.bf16.msra.mxu0 0
  %824 = vmatprep.subr.bf16.mxu0 0
  %825 = vmatpush1.bf16.msra.mxu0 0
  %826 = vmatprep.subr.bf16.mxu0 0
  %827 = vmatpush1.bf16.msra.mxu0 0
  %828 = vmatprep.subr.bf16.mxu0 0
  %829 = vmatpush1.bf16.msra.mxu0 0
  %830 = vmatprep.subr.bf16.mxu0 0
  %831 = vmatpush1.bf16.msra.mxu0 0
  %832 = vmatprep.subr.bf16.mxu0 0
  %833 = vmatpush1.bf16.msra.mxu0 0
  %834 = vmatprep.subr.bf16.mxu0 0
  %835 = vmatpush1.bf16.msra.mxu0 0
  %836 = vmatprep.subr.bf16.mxu0 0
  %837 = vmatpush1.bf16.msra.mxu0 0
  %838 = vmatprep.subr.bf16.mxu0 0
  %839 = vmatpush1.bf16.msra.mxu0 0
  %840 = vmatprep.subr.bf16.mxu0 0
  %841 = vmatpush1.bf16.msra.mxu0 0
  %842 = vmatprep.mubr.bf16.mxu0 0
  %843 = vmatmul.mubr.bf16.gmra.mrb[0].mxu0 %v808
  %v844 = vpop.f32.mrb[0].mxu0
  %v845 = vadd.f32 %v333, %v844
  %v846 = vpop.f32.mrb[0].mxu0
  %v847 = vpop.f32.mrb[0].mxu0
  %v848 = vpop.f32.mrb[0].mxu0
  %849 = vdwg.mxu0
  %v850 = vxor.u32 %v845, 2147483648
  %v851 = vmul.f32 %v850, 1.442695
  %v852 = vpow.pop %v851
  %v853 = vadd.f32 %v852, 1.0
  %v854 = vrcp.pop %v853
  %v855 = vmul.f32 1.0, %v854
  %v856 = vtanh.pop %v845
  %v857 = vmul.f32 %v855, %v718
  %859 = vrot.lane.b32.xlu0 %v856, 64
  %v860 = vpop.permute.xlu0 %859
  %v862 = vmul.f32 %v855, %v860
  %864 = vrot.lane.b32.xlu0 %v862, 32
  %v865 = vpop.permute.xlu0 %864
  %v867 = vadd.f32 %v857, %v865
  %v868 = vtanh.pop %v867
  %870 = vrot.lane.b32.xlu0 %v868, 64
  %v871 = vpop.permute.xlu0 %870
  %v873 = vmul.f32 %v855, %v871
  %v874 = vpack.c.bf16 %v796, %v796
  %876 = vrot.lane.b32.xlu0 %v874, 32
  %v877 = vpop.permute.xlu0 %876
  %v879 = vsel %vm182, %v877, 0
  %881 = vmatprep.subr.bf16.mxu0 0
  %882 = vmatpush1.bf16.msra.mxu0 %v178
  %883 = vmatprep.subr.bf16.mxu0 0
  %884 = vmatpush1.bf16.msra.mxu0 %v179
  %885 = vmatprep.subr.bf16.mxu0 0
  %886 = vmatpush1.bf16.msra.mxu0 0
  %887 = vmatprep.subr.bf16.mxu0 0
  %888 = vmatpush1.bf16.msra.mxu0 0
  %889 = vmatprep.subr.bf16.mxu0 0
  %890 = vmatpush1.bf16.msra.mxu0 0
  %891 = vmatprep.subr.bf16.mxu0 0
  %892 = vmatpush1.bf16.msra.mxu0 0
  %893 = vmatprep.subr.bf16.mxu0 0
  %894 = vmatpush1.bf16.msra.mxu0 0
  %895 = vmatprep.subr.bf16.mxu0 0
  %896 = vmatpush1.bf16.msra.mxu0 0
  %897 = vmatprep.subr.bf16.mxu0 0
  %898 = vmatpush1.bf16.msra.mxu0 0
  %899 = vmatprep.subr.bf16.mxu0 0
  %900 = vmatpush1.bf16.msra.mxu0 0
  %901 = vmatprep.subr.bf16.mxu0 0
  %902 = vmatpush1.bf16.msra.mxu0 0
  %903 = vmatprep.subr.bf16.mxu0 0
  %904 = vmatpush1.bf16.msra.mxu0 0
  %905 = vmatprep.subr.bf16.mxu0 0
  %906 = vmatpush1.bf16.msra.mxu0 0
  %907 = vmatprep.subr.bf16.mxu0 0
  %908 = vmatpush1.bf16.msra.mxu0 0
  %909 = vmatprep.subr.bf16.mxu0 0
  %910 = vmatpush1.bf16.msra.mxu0 0
  %911 = vmatprep.subr.bf16.mxu0 0
  %912 = vmatpush1.bf16.msra.mxu0 0
  %913 = vmatprep.mubr.bf16.mxu0 0
  %914 = vmatmul.mubr.bf16.gmra.mrb[0].mxu0 %v879
  %v915 = vpop.f32.mrb[0].mxu0
  %v916 = vadd.f32 0.0, %v915
  %v917 = vpop.f32.mrb[0].mxu0
  %v918 = vpop.f32.mrb[0].mxu0
  %v919 = vpop.f32.mrb[0].mxu0
  %920 = vdwg.mxu0
  %v921 = vadd.f32 %v146, %v916
  %v922 = vxor.u32 %v921, 2147483648
  %v923 = vmul.f32 %v922, 1.442695
  %v924 = vpow.pop %v923
  %v925 = vadd.f32 %v924, 1.0
  %v926 = vrcp.pop %v925
  %v927 = vmul.f32 1.0, %v926
  %v928 = vtanh.pop %v921
  %v929 = vmul.f32 %v927, %v790
  %931 = vrot.lane.b32.xlu0 %v928, 64
  %v932 = vpop.permute.xlu0 %931
  %v934 = vmul.f32 %v927, %v932
  %936 = vrot.lane.b32.xlu0 %v934, 32
  %v937 = vpop.permute.xlu0 %936
  %v939 = vadd.f32 %v929, %v937
  %v940 = vtanh.pop %v939
  %942 = vrot.lane.b32.xlu0 %v940, 64
  %v943 = vpop.permute.xlu0 %942
  %v945 = vmul.f32 %v927, %v943
  %947 = vrot.lane.b32.xlu0 %v796, 32
  %v948 = vpop.permute.xlu0 %947
  %951 = vrot.lane.b32.xlu0 %v873, 64
  %v952 = vpop.permute.xlu0 %951
  %v954 = vsel %vm182, %v948, %v952
  %v955 = vpack.c.bf16 %v954, %v954
  %v957 = vsel %vm359, %v955, 0
  %959 = vmatprep.subr.bf16.mxu0 0
  %960 = vmatpush1.bf16.msra.mxu0 %v351
  %961 = vmatprep.subr.bf16.mxu0 0
  %962 = vmatpush1.bf16.msra.mxu0 %v352
  %963 = vmatprep.subr.bf16.mxu0 0
  %964 = vmatpush1.bf16.msra.mxu0 %v353
  %965 = vmatprep.subr.bf16.mxu0 0
  %966 = vmatpush1.bf16.msra.mxu0 %v354
  %967 = vmatprep.subr.bf16.mxu0 0
  %968 = vmatpush1.bf16.msra.mxu0 0
  %969 = vmatprep.subr.bf16.mxu0 0
  %970 = vmatpush1.bf16.msra.mxu0 0
  %971 = vmatprep.subr.bf16.mxu0 0
  %972 = vmatpush1.bf16.msra.mxu0 0
  %973 = vmatprep.subr.bf16.mxu0 0
  %974 = vmatpush1.bf16.msra.mxu0 0
  %975 = vmatprep.subr.bf16.mxu0 0
  %976 = vmatpush1.bf16.msra.mxu0 0
  %977 = vmatprep.subr.bf16.mxu0 0
  %978 = vmatpush1.bf16.msra.mxu0 0
  %979 = vmatprep.subr.bf16.mxu0 0
  %980 = vmatpush1.bf16.msra.mxu0 0
  %981 = vmatprep.subr.bf16.mxu0 0
  %982 = vmatpush1.bf16.msra.mxu0 0
  %983 = vmatprep.subr.bf16.mxu0 0
  %984 = vmatpush1.bf16.msra.mxu0 0
  %985 = vmatprep.subr.bf16.mxu0 0
  %986 = vmatpush1.bf16.msra.mxu0 0
  %987 = vmatprep.subr.bf16.mxu0 0
  %988 = vmatpush1.bf16.msra.mxu0 0
  %989 = vmatprep.subr.bf16.mxu0 0
  %990 = vmatpush1.bf16.msra.mxu0 0
  %991 = vmatprep.mubr.bf16.mxu0 0
  %992 = vmatmul.mubr.bf16.gmra.mrb[0].mxu0 %v957
  %v993 = vpop.f32.mrb[0].mxu0
  %v994 = vadd.f32 %v333, %v993
  %v995 = vpop.f32.mrb[0].mxu0
  %v996 = vpop.f32.mrb[0].mxu0
  %v997 = vpop.f32.mrb[0].mxu0
  %998 = vdwg.mxu0
  %v999 = vxor.u32 %v994, 2147483648
  %v1000 = vmul.f32 %v999, 1.442695
  %v1001 = vpow.pop %v1000
  %v1002 = vadd.f32 %v1001, 1.0
  %v1003 = vrcp.pop %v1002
  %v1004 = vmul.f32 1.0, %v1003
  %v1005 = vtanh.pop %v994
  %v1006 = vmul.f32 %v1004, %v867
  %1008 = vrot.lane.b32.xlu0 %v1005, 64
  %v1009 = vpop.permute.xlu0 %1008
  %v1011 = vmul.f32 %v1004, %v1009
  %1013 = vrot.lane.b32.xlu0 %v1011, 32
  %v1014 = vpop.permute.xlu0 %1013
  %v1016 = vadd.f32 %v1006, %v1014
  %v1017 = vtanh.pop %v1016
  %1019 = vrot.lane.b32.xlu0 %v1017, 64
  %v1020 = vpop.permute.xlu0 %1019
  %v1022 = vmul.f32 %v1004, %v1020
  %v1023 = vpack.c.bf16 %v945, %v945
  %1025 = vrot.lane.b32.xlu0 %v1023, 32
  %v1026 = vpop.permute.xlu0 %1025
  %v1028 = vsel %vm182, %v1026, 0
  %1030 = vmatprep.subr.bf16.mxu0 0
  %1031 = vmatpush1.bf16.msra.mxu0 %v178
  %1032 = vmatprep.subr.bf16.mxu0 0
  %1033 = vmatpush1.bf16.msra.mxu0 %v179
  %1034 = vmatprep.subr.bf16.mxu0 0
  %1035 = vmatpush1.bf16.msra.mxu0 0
  %1036 = vmatprep.subr.bf16.mxu0 0
  %1037 = vmatpush1.bf16.msra.mxu0 0
  %1038 = vmatprep.subr.bf16.mxu0 0
  %1039 = vmatpush1.bf16.msra.mxu0 0
  %1040 = vmatprep.subr.bf16.mxu0 0
  %1041 = vmatpush1.bf16.msra.mxu0 0
  %1042 = vmatprep.subr.bf16.mxu0 0
  %1043 = vmatpush1.bf16.msra.mxu0 0
  %1044 = vmatprep.subr.bf16.mxu0 0
  %1045 = vmatpush1.bf16.msra.mxu0 0
  %1046 = vmatprep.subr.bf16.mxu0 0
  %1047 = vmatpush1.bf16.msra.mxu0 0
  %1048 = vmatprep.subr.bf16.mxu0 0
  %1049 = vmatpush1.bf16.msra.mxu0 0
  %1050 = vmatprep.subr.bf16.mxu0 0
  %1051 = vmatpush1.bf16.msra.mxu0 0
  %1052 = vmatprep.subr.bf16.mxu0 0
  %1053 = vmatpush1.bf16.msra.mxu0 0
  %1054 = vmatprep.subr.bf16.mxu0 0
  %1055 = vmatpush1.bf16.msra.mxu0 0
  %1056 = vmatprep.subr.bf16.mxu0 0
  %1057 = vmatpush1.bf16.msra.mxu0 0
  %1058 = vmatprep.subr.bf16.mxu0 0
  %1059 = vmatpush1.bf16.msra.mxu0 0
  %1060 = vmatprep.subr.bf16.mxu0 0
  %1061 = vmatpush1.bf16.msra.mxu0 0
  %1062 = vmatprep.mubr.bf16.mxu0 0
  %1063 = vmatmul.mubr.bf16.gmra.mrb[0].mxu0 %v1028
  %v1064 = vpop.f32.mrb[0].mxu0
  %v1065 = vadd.f32 0.0, %v1064
  %v1066 = vpop.f32.mrb[0].mxu0
  %v1067 = vpop.f32.mrb[0].mxu0
  %v1068 = vpop.f32.mrb[0].mxu0
  %1069 = vdwg.mxu0
  %v1070 = vadd.f32 %v151, %v1065
  %v1071 = vxor.u32 %v1070, 2147483648
  %v1072 = vmul.f32 %v1071, 1.442695
  %v1073 = vpow.pop %v1072
  %v1074 = vadd.f32 %v1073, 1.0
  %v1075 = vrcp.pop %v1074
  %v1076 = vmul.f32 1.0, %v1075
  %v1077 = vtanh.pop %v1070
  %v1078 = vmul.f32 %v1076, %v939
  %1080 = vrot.lane.b32.xlu0 %v1077, 64
  %v1081 = vpop.permute.xlu0 %1080
  %v1083 = vmul.f32 %v1076, %v1081
  %1085 = vrot.lane.b32.xlu0 %v1083, 32
  %v1086 = vpop.permute.xlu0 %1085
  %v1088 = vadd.f32 %v1078, %v1086
  %v1089 = vtanh.pop %v1088
  %1091 = vrot.lane.b32.xlu0 %v1089, 64
  %v1092 = vpop.permute.xlu0 %1091
  %v1094 = vmul.f32 %v1076, %v1092
  %1096 = vrot.lane.b32.xlu0 %v945, 32
  %v1097 = vpop.permute.xlu0 %1096
  %1100 = vrot.lane.b32.xlu0 %v1022, 64
  %v1101 = vpop.permute.xlu0 %1100
  %v1103 = vsel %vm182, %v1097, %v1101
  %v1104 = vpack.c.bf16 %v1103, %v1103
  %v1106 = vsel %vm359, %v1104, 0
  %1108 = vmatprep.subr.bf16.mxu0 0
  %1109 = vmatpush1.bf16.msra.mxu0 %v351
  %1110 = vmatprep.subr.bf16.mxu0 0
  %1111 = vmatpush1.bf16.msra.mxu0 %v352
  %1112 = vmatprep.subr.bf16.mxu0 0
  %1113 = vmatpush1.bf16.msra.mxu0 %v353
  %1114 = vmatprep.subr.bf16.mxu0 0
  %1115 = vmatpush1.bf16.msra.mxu0 %v354
  %1116 = vmatprep.subr.bf16.mxu0 0
  %1117 = vmatpush1.bf16.msra.mxu0 0
  %1118 = vmatprep.subr.bf16.mxu0 0
  %1119 = vmatpush1.bf16.msra.mxu0 0
  %1120 = vmatprep.subr.bf16.mxu0 0
  %1121 = vmatpush1.bf16.msra.mxu0 0
  %1122 = vmatprep.subr.bf16.mxu0 0
  %1123 = vmatpush1.bf16.msra.mxu0 0
  %1124 = vmatprep.subr.bf16.mxu0 0
  %1125 = vmatpush1.bf16.msra.mxu0 0
  %1126 = vmatprep.subr.bf16.mxu0 0
  %1127 = vmatpush1.bf16.msra.mxu0 0
  %1128 = vmatprep.subr.bf16.mxu0 0
  %1129 = vmatpush1.bf16.msra.mxu0 0
  %1130 = vmatprep.subr.bf16.mxu0 0
  %1131 = vmatpush1.bf16.msra.mxu0 0
  %1132 = vmatprep.subr.bf16.mxu0 0
  %1133 = vmatpush1.bf16.msra.mxu0 0
  %1134 = vmatprep.subr.bf16.mxu0 0
  %1135 = vmatpush1.bf16.msra.mxu0 0
  %1136 = vmatprep.subr.bf16.mxu0 0
  %1137 = vmatpush1.bf16.msra.mxu0 0
  %1138 = vmatprep.subr.bf16.mxu0 0
  %1139 = vmatpush1.bf16.msra.mxu0 0
  %1140 = vmatprep.mubr.bf16.mxu0 0
  %1141 = vmatmul.mubr.bf16.gmra.mrb[0].mxu0 %v1106
  %v1142 = vpop.f32.mrb[0].mxu0
  %v1143 = vadd.f32 %v333, %v1142
  %v1144 = vpop.f32.mrb[0].mxu0
  %v1145 = vpop.f32.mrb[0].mxu0
  %v1146 = vpop.f32.mrb[0].mxu0
  %1147 = vdwg.mxu0
  %v1148 = vxor.u32 %v1143, 2147483648
  %v1149 = vmul.f32 %v1148, 1.442695
  %v1150 = vpow.pop %v1149
  %v1151 = vadd.f32 %v1150, 1.0
  %v1152 = vrcp.pop %v1151
  %v1153 = vmul.f32 1.0, %v1152
  %v1154 = vtanh.pop %v1143
  %v1155 = vmul.f32 %v1153, %v1016
  %1157 = vrot.lane.b32.xlu0 %v1154, 64
  %v1158 = vpop.permute.xlu0 %1157
  %v1160 = vmul.f32 %v1153, %v1158
  %1162 = vrot.lane.b32.xlu0 %v1160, 32
  %v1163 = vpop.permute.xlu0 %1162
  %v1165 = vadd.f32 %v1155, %v1163
  %v1166 = vtanh.pop %v1165
  %1168 = vrot.lane.b32.xlu0 %v1166, 64
  %v1169 = vpop.permute.xlu0 %1168
  %v1171 = vmul.f32 %v1153, %v1169
  %v1172 = vpack.c.bf16 %v1094, %v1094
  %1174 = vrot.lane.b32.xlu0 %v1172, 32
  %v1175 = vpop.permute.xlu0 %1174
  %v1177 = vsel %vm182, %v1175, 0
  %1179 = vmatprep.subr.bf16.mxu0 0
  %1180 = vmatpush1.bf16.msra.mxu0 %v178
  %1181 = vmatprep.subr.bf16.mxu0 0
  %1182 = vmatpush1.bf16.msra.mxu0 %v179
  %1183 = vmatprep.subr.bf16.mxu0 0
  %1184 = vmatpush1.bf16.msra.mxu0 0
  %1185 = vmatprep.subr.bf16.mxu0 0
  %1186 = vmatpush1.bf16.msra.mxu0 0
  %1187 = vmatprep.subr.bf16.mxu0 0
  %1188 = vmatpush1.bf16.msra.mxu0 0
  %1189 = vmatprep.subr.bf16.mxu0 0
  %1190 = vmatpush1.bf16.msra.mxu0 0
  %1191 = vmatprep.subr.bf16.mxu0 0
  %1192 = vmatpush1.bf16.msra.mxu0 0
  %1193 = vmatprep.subr.bf16.mxu0 0
  %1194 = vmatpush1.bf16.msra.mxu0 0
  %1195 = vmatprep.subr.bf16.mxu0 0
  %1196 = vmatpush1.bf16.msra.mxu0 0
  %1197 = vmatprep.subr.bf16.mxu0 0
  %1198 = vmatpush1.bf16.msra.mxu0 0
  %1199 = vmatprep.subr.bf16.mxu0 0
  %1200 = vmatpush1.bf16.msra.mxu0 0
  %1201 = vmatprep.subr.bf16.mxu0 0
  %1202 = vmatpush1.bf16.msra.mxu0 0
  %1203 = vmatprep.subr.bf16.mxu0 0
  %1204 = vmatpush1.bf16.msra.mxu0 0
  %1205 = vmatprep.subr.bf16.mxu0 0
  %1206 = vmatpush1.bf16.msra.mxu0 0
  %1207 = vmatprep.subr.bf16.mxu0 0
  %1208 = vmatpush1.bf16.msra.mxu0 0
  %1209 = vmatprep.subr.bf16.mxu0 0
  %1210 = vmatpush1.bf16.msra.mxu0 0
  %1211 = vmatprep.mubr.bf16.mxu0 0
  %1212 = vmatmul.mubr.bf16.gmra.mrb[0].mxu0 %v1177
  %v1213 = vpop.f32.mrb[0].mxu0
  %v1214 = vadd.f32 0.0, %v1213
  %v1215 = vpop.f32.mrb[0].mxu0
  %v1216 = vpop.f32.mrb[0].mxu0
  %v1217 = vpop.f32.mrb[0].mxu0
  %1218 = vdwg.mxu0
  %v1219 = vadd.f32 %v154, %v1214
  %v1220 = vxor.u32 %v1219, 2147483648
  %v1221 = vmul.f32 %v1220, 1.442695
  %v1222 = vpow.pop %v1221
  %v1223 = vadd.f32 %v1222, 1.0
  %v1224 = vrcp.pop %v1223
  %v1225 = vmul.f32 1.0, %v1224
  %v1226 = vtanh.pop %v1219
  %v1227 = vmul.f32 %v1225, %v1088
  %1229 = vrot.lane.b32.xlu0 %v1226, 64
  %v1230 = vpop.permute.xlu0 %1229
  %v1232 = vmul.f32 %v1225, %v1230
  %1234 = vrot.lane.b32.xlu0 %v1232, 32
  %v1235 = vpop.permute.xlu0 %1234
  %v1237 = vadd.f32 %v1227, %v1235
  %v1238 = vtanh.pop %v1237
  %1240 = vrot.lane.b32.xlu0 %v1238, 64
  %v1241 = vpop.permute.xlu0 %1240
  %v1243 = vmul.f32 %v1225, %v1241
  %1245 = vrot.lane.b32.xlu0 %v1094, 32
  %v1246 = vpop.permute.xlu0 %1245
  %1249 = vrot.lane.b32.xlu0 %v1171, 64
  %v1250 = vpop.permute.xlu0 %1249
  %v1252 = vsel %vm182, %v1246, %v1250
  %v1253 = vpack.c.bf16 %v1252, %v1252
  %v1255 = vsel %vm359, %v1253, 0
  %1257 = vmatprep.subr.bf16.mxu0 0
  %1258 = vmatpush1.bf16.msra.mxu0 %v351
  %1259 = vmatprep.subr.bf16.mxu0 0
  %1260 = vmatpush1.bf16.msra.mxu0 %v352
  %1261 = vmatprep.subr.bf16.mxu0 0
  %1262 = vmatpush1.bf16.msra.mxu0 %v353
  %1263 = vmatprep.subr.bf16.mxu0 0
  %1264 = vmatpush1.bf16.msra.mxu0 %v354
  %1265 = vmatprep.subr.bf16.mxu0 0
  %1266 = vmatpush1.bf16.msra.mxu0 0
  %1267 = vmatprep.subr.bf16.mxu0 0
  %1268 = vmatpush1.bf16.msra.mxu0 0
  %1269 = vmatprep.subr.bf16.mxu0 0
  %1270 = vmatpush1.bf16.msra.mxu0 0
  %1271 = vmatprep.subr.bf16.mxu0 0
  %1272 = vmatpush1.bf16.msra.mxu0 0
  %1273 = vmatprep.subr.bf16.mxu0 0
  %1274 = vmatpush1.bf16.msra.mxu0 0
  %1275 = vmatprep.subr.bf16.mxu0 0
  %1276 = vmatpush1.bf16.msra.mxu0 0
  %1277 = vmatprep.subr.bf16.mxu0 0
  %1278 = vmatpush1.bf16.msra.mxu0 0
  %1279 = vmatprep.subr.bf16.mxu0 0
  %1280 = vmatpush1.bf16.msra.mxu0 0
  %1281 = vmatprep.subr.bf16.mxu0 0
  %1282 = vmatpush1.bf16.msra.mxu0 0
  %1283 = vmatprep.subr.bf16.mxu0 0
  %1284 = vmatpush1.bf16.msra.mxu0 0
  %1285 = vmatprep.subr.bf16.mxu0 0
  %1286 = vmatpush1.bf16.msra.mxu0 0
  %1287 = vmatprep.subr.bf16.mxu0 0
  %1288 = vmatpush1.bf16.msra.mxu0 0
  %1289 = vmatprep.mubr.bf16.mxu0 0
  %1290 = vmatmul.mubr.bf16.gmra.mrb[0].mxu0 %v1255
  %v1291 = vpop.f32.mrb[0].mxu0
  %v1292 = vadd.f32 %v333, %v1291
  %v1293 = vpop.f32.mrb[0].mxu0
  %v1294 = vpop.f32.mrb[0].mxu0
  %v1295 = vpop.f32.mrb[0].mxu0
  %1296 = vdwg.mxu0
  %v1297 = vxor.u32 %v1292, 2147483648
  %v1298 = vmul.f32 %v1297, 1.442695
  %v1299 = vpow.pop %v1298
  %v1300 = vadd.f32 %v1299, 1.0
  %v1301 = vrcp.pop %v1300
  %v1302 = vmul.f32 1.0, %v1301
  %v1303 = vtanh.pop %v1292
  %v1304 = vmul.f32 %v1302, %v1165
  %1306 = vrot.lane.b32.xlu0 %v1303, 64
  %v1307 = vpop.permute.xlu0 %1306
  %v1309 = vmul.f32 %v1302, %v1307
  %1311 = vrot.lane.b32.xlu0 %v1309, 32
  %v1312 = vpop.permute.xlu0 %1311
  %v1314 = vadd.f32 %v1304, %v1312
  %v1315 = vtanh.pop %v1314
  %1317 = vrot.lane.b32.xlu0 %v1315, 64
  %v1318 = vpop.permute.xlu0 %1317
  %v1320 = vmul.f32 %v1302, %v1318
  %1322 = vrot.lane.b32.xlu0 %v1243, 32
  %v1323 = vpop.permute.xlu0 %1322
  %1326 = vrot.lane.b32.xlu0 %v1320, 64
  %v1327 = vpop.permute.xlu0 %1326
  %v1329 = vsel %vm182, %v1323, %v1327
  %v1330 = vpack.c.bf16 %v1329, %v1329
  %v1332 = vsel %vm359, %v1330, 0
  %1334 = vmatprep.subr.bf16.mxu0 0
  %1335 = vmatpush1.bf16.msra.mxu0 %v351
  %1336 = vmatprep.subr.bf16.mxu0 0
  %1337 = vmatpush1.bf16.msra.mxu0 %v352
  %1338 = vmatprep.subr.bf16.mxu0 0
  %1339 = vmatpush1.bf16.msra.mxu0 %v353
  %1340 = vmatprep.subr.bf16.mxu0 0
  %1341 = vmatpush1.bf16.msra.mxu0 %v354
  %1342 = vmatprep.subr.bf16.mxu0 0
  %1343 = vmatpush1.bf16.msra.mxu0 0
  %1344 = vmatprep.subr.bf16.mxu0 0
  %1345 = vmatpush1.bf16.msra.mxu0 0
  %1346 = vmatprep.subr.bf16.mxu0 0
  %1347 = vmatpush1.bf16.msra.mxu0 0
  %1348 = vmatprep.subr.bf16.mxu0 0
  %1349 = vmatpush1.bf16.msra.mxu0 0
  %1350 = vmatprep.subr.bf16.mxu0 0
  %1351 = vmatpush1.bf16.msra.mxu0 0
  %1352 = vmatprep.subr.bf16.mxu0 0
  %1353 = vmatpush1.bf16.msra.mxu0 0
  %1354 = vmatprep.subr.bf16.mxu0 0
  %1355 = vmatpush1.bf16.msra.mxu0 0
  %1356 = vmatprep.subr.bf16.mxu0 0
  %1357 = vmatpush1.bf16.msra.mxu0 0
  %1358 = vmatprep.subr.bf16.mxu0 0
  %1359 = vmatpush1.bf16.msra.mxu0 0
  %1360 = vmatprep.subr.bf16.mxu0 0
  %1361 = vmatpush1.bf16.msra.mxu0 0
  %1362 = vmatprep.subr.bf16.mxu0 0
  %1363 = vmatpush1.bf16.msra.mxu0 0
  %1364 = vmatprep.subr.bf16.mxu0 0
  %1365 = vmatpush1.bf16.msra.mxu0 0
  %1366 = vmatprep.mubr.bf16.mxu0 0
  %1367 = vmatmul.mubr.bf16.gmra.mrb[0].mxu0 %v1332
  %v1368 = vpop.f32.mrb[0].mxu0
  %v1369 = vadd.f32 %v333, %v1368
  %v1370 = vpop.f32.mrb[0].mxu0
  %v1371 = vpop.f32.mrb[0].mxu0
  %v1372 = vpop.f32.mrb[0].mxu0
  %1373 = vdwg.mxu0
  %v1374 = vxor.u32 %v1369, 2147483648
  %v1375 = vmul.f32 %v1374, 1.442695
  %v1376 = vpow.pop %v1375
  %v1377 = vadd.f32 %v1376, 1.0
  %v1378 = vrcp.pop %v1377
  %v1379 = vmul.f32 1.0, %v1378
  %v1380 = vtanh.pop %v1369
  %v1381 = vmul.f32 %v1379, %v1314
  %1383 = vrot.lane.b32.xlu0 %v1380, 64
  %v1384 = vpop.permute.xlu0 %1383
  %v1386 = vmul.f32 %v1379, %v1384
  %1388 = vrot.lane.b32.xlu0 %v1386, 32
  %v1389 = vpop.permute.xlu0 %1388
  %v1391 = vadd.f32 %v1381, %v1389
  %v1392 = vtanh.pop %v1391
  %1394 = vrot.lane.b32.xlu0 %v1392, 64
  %v1395 = vpop.permute.xlu0 %1394
  %v1397 = vmul.f32 %v1379, %v1395
  %v1398 = vpack.c.bf16 %v1397, %v1397
  %v1399 = vld [vmem:[%s6] sm:$0xff]
  %v1400 = vld [vmem:[%s6 + $0x8] sm:$0xff]
  %v1401 = vld [vmem:[%s6 + $0x10] sm:$0xff]
  %v1402 = vld [vmem:[%s6 + $0x18] sm:$0xff]
  %v1403 = vld [vmem:[%s7] sm:$0x3]
  %v1405 = vlaneseq
  %v1406 = vshrl.u32 %v1405, 7
  %v1407 = vsub.s32 0, %v1406
  %v1408 = vrot.slane %v1403, %v1407
  %v1409 = vlaneseq
  %v1410 = vshrl.u32 %v1409, 7
  %v1411 = vsub.s32 1, %v1410
  %v1412 = vrot.slane %v1403, %v1411
  %1416 = vrot.lane.b32.xlu0 %v1398, 32
  %v1417 = vpop.permute.xlu0 %1416
  %v1422 = vunpack.c.l.b16 %v1399
  %v1423 = vunpack.c.h.b16 %v1399
  %v1424 = vunpack.c.l.b16 %v1400
  %v1425 = vunpack.c.h.b16 %v1400
  %v1426 = vunpack.c.l.b16 %v1401
  %v1427 = vunpack.c.h.b16 %v1401
  %v1428 = vunpack.c.l.b16 %v1402
  %v1429 = vunpack.c.h.b16 %v1402
  %v1430 = vpack.c.b16 %v1424, %v1422
  %v1431 = vpack.c.b16 %v1425, %v1423
  %v1432 = vpack.c.b16 %v1428, %v1426
  %v1433 = vpack.c.b16 %v1429, %v1427
  %v1439 = vsel %vm182, %v1417, 0
  %1441 = vmatprep.subr.bf16.mxu0 %v1431
  %1442 = vmatpush1.bf16.msra.mxu0 %v1430
  %1443 = vmatprep.subr.bf16.mxu0 %v1433
  %1444 = vmatpush1.bf16.msra.mxu0 %v1432
  %1445 = vmatprep.subr.bf16.mxu0 0
  %1446 = vmatpush1.bf16.msra.mxu0 0
  %1447 = vmatprep.subr.bf16.mxu0 0
  %1448 = vmatpush1.bf16.msra.mxu0 0
  %1449 = vmatprep.subr.bf16.mxu0 0
  %1450 = vmatpush1.bf16.msra.mxu0 0
  %1451 = vmatprep.subr.bf16.mxu0 0
  %1452 = vmatpush1.bf16.msra.mxu0 0
  %1453 = vmatprep.subr.bf16.mxu0 0
  %1454 = vmatpush1.bf16.msra.mxu0 0
  %1455 = vmatprep.subr.bf16.mxu0 0
  %1456 = vmatpush1.bf16.msra.mxu0 0
  %1457 = vmatprep.subr.bf16.mxu0 0
  %1458 = vmatpush1.bf16.msra.mxu0 0
  %1459 = vmatprep.subr.bf16.mxu0 0
  %1460 = vmatpush1.bf16.msra.mxu0 0
  %1461 = vmatprep.subr.bf16.mxu0 0
  %1462 = vmatpush1.bf16.msra.mxu0 0
  %1463 = vmatprep.subr.bf16.mxu0 0
  %1464 = vmatpush1.bf16.msra.mxu0 0
  %1465 = vmatprep.subr.bf16.mxu0 0
  %1466 = vmatpush1.bf16.msra.mxu0 0
  %1467 = vmatprep.subr.bf16.mxu0 0
  %1468 = vmatpush1.bf16.msra.mxu0 0
  %1469 = vmatprep.subr.bf16.mxu0 0
  %1470 = vmatpush1.bf16.msra.mxu0 0
  %1471 = vmatprep.subr.bf16.mxu0 0
  %1472 = vmatpush1.bf16.msra.mxu0 0
  %1473 = vmatprep.mubr.bf16.mxu0 0
  %1474 = vmatmul.mubr.bf16.gmra.mrb[0].mxu0 %v1439
  %v1475 = vpop.f32.mrb[0].mxu0
  %v1476 = vadd.f32 %v1408, %v1475
  %v1477 = vpop.f32.mrb[0].mxu0
  %v1478 = vadd.f32 %v1412, %v1477
  %v1479 = vpop.f32.mrb[0].mxu0
  %v1480 = vpop.f32.mrb[0].mxu0
  %1481 = vdwg.mxu0
  %v1482 = vmax.f32 %v1476, 0.0
  %v1483 = vmax.f32 %v1478, 0.0
  %v1484 = vpack.c.bf16 %v1482, %v1482
  %v1485 = vpack.c.bf16 %v1483, %v1483
  %v1486 = vld [vmem:[%s8] sm:$0xf]
  %v1487 = vld [vmem:[%s8 + $0x4] sm:$0xf]
  %v1488 = vld [vmem:[%s8 + $0x8] sm:$0xf]
  %v1489 = vld [vmem:[%s8 + $0xc] sm:$0xf]
  %v1490 = vld [vmem:[%s8 + $0x10] sm:$0xf]
  %v1491 = vld [vmem:[%s8 + $0x14] sm:$0xf]
  %v1492 = vld [vmem:[%s8 + $0x18] sm:$0xf]
  %v1493 = vld [vmem:[%s8 + $0x1c] sm:$0xf]
  %v1494 = vld [vmem:[%s8 + $0x20] sm:$0xf]
  %v1495 = vld [vmem:[%s8 + $0x24] sm:$0xf]
  %v1496 = vld [vmem:[%s8 + $0x28] sm:$0xf]
  %v1497 = vld [vmem:[%s8 + $0x2c] sm:$0xf]
  %v1498 = vld [vmem:[%s8 + $0x30] sm:$0xf]
  %v1499 = vld [vmem:[%s8 + $0x34] sm:$0xf]
  %v1500 = vld [vmem:[%s8 + $0x38] sm:$0xf]
  %v1501 = vld [vmem:[%s8 + $0x3c] sm:$0xf]
  %v1502 = vld [vmem:[%s8 + $0x40] sm:$0xf]
  %v1503 = vld [vmem:[%s8 + $0x44] sm:$0xf]
  %v1504 = vld [vmem:[%s8 + $0x48] sm:$0xf]
  %v1505 = vld [vmem:[%s8 + $0x4c] sm:$0xf]
  %v1506 = vld [vmem:[%s8 + $0x50] sm:$0xf]
  %v1507 = vld [vmem:[%s8 + $0x54] sm:$0xf]
  %v1508 = vld [vmem:[%s8 + $0x58] sm:$0xf]
  %v1509 = vld [vmem:[%s8 + $0x5c] sm:$0xf]
  %v1510 = vld [vmem:[%s8 + $0x60] sm:$0xf]
  %v1511 = vld [vmem:[%s8 + $0x64] sm:$0xf]
  %v1512 = vld [vmem:[%s8 + $0x68] sm:$0xf]
  %v1513 = vld [vmem:[%s8 + $0x6c] sm:$0xf]
  %v1514 = vld [vmem:[%s8 + $0x70] sm:$0xf]
  %v1515 = vld [vmem:[%s8 + $0x74] sm:$0xf]
  %v1516 = vld [vmem:[%s8 + $0x78] sm:$0xf]
  %v1517 = vld [vmem:[%s8 + $0x7c] sm:$0xf]
  %v1518 = vld [vmem:[%s9] sm:$0x1]
  %v1520 = vlaneseq
  %v1521 = vshrl.u32 %v1520, 7
  %v1522 = vsub.s32 0, %v1521
  %v1523 = vrot.slane %v1518, %v1522
  %v1557 = vunpack.c.l.b16 %v1486
  %v1558 = vunpack.c.l.b16 %v1487
  %v1559 = vunpack.c.l.b16 %v1488
  %v1560 = vunpack.c.l.b16 %v1489
  %v1561 = vunpack.c.l.b16 %v1490
  %v1562 = vunpack.c.l.b16 %v1491
  %v1563 = vunpack.c.l.b16 %v1492
  %v1564 = vunpack.c.l.b16 %v1493
  %v1565 = vunpack.c.l.b16 %v1494
  %v1566 = vunpack.c.l.b16 %v1495
  %v1567 = vunpack.c.l.b16 %v1496
  %v1568 = vunpack.c.l.b16 %v1497
  %v1569 = vunpack.c.l.b16 %v1498
  %v1570 = vunpack.c.l.b16 %v1499
  %v1571 = vunpack.c.l.b16 %v1500
  %v1572 = vunpack.c.l.b16 %v1501
  %v1573 = vunpack.c.l.b16 %v1502
  %v1574 = vunpack.c.l.b16 %v1503
  %v1575 = vunpack.c.l.b16 %v1504
  %v1576 = vunpack.c.l.b16 %v1505
  %v1577 = vunpack.c.l.b16 %v1506
  %v1578 = vunpack.c.l.b16 %v1507
  %v1579 = vunpack.c.l.b16 %v1508
  %v1580 = vunpack.c.l.b16 %v1509
  %v1581 = vunpack.c.l.b16 %v1510
  %v1582 = vunpack.c.l.b16 %v1511
  %v1583 = vunpack.c.l.b16 %v1512
  %v1584 = vunpack.c.l.b16 %v1513
  %v1585 = vunpack.c.l.b16 %v1514
  %v1586 = vunpack.c.l.b16 %v1515
  %v1587 = vunpack.c.l.b16 %v1516
  %v1588 = vunpack.c.l.b16 %v1517
  %v1589 = vpack.c.b16 %v1558, %v1557
  %v1590 = vpack.c.b16 %v1560, %v1559
  %v1591 = vpack.c.b16 %v1562, %v1561
  %v1592 = vpack.c.b16 %v1564, %v1563
  %v1593 = vpack.c.b16 %v1566, %v1565
  %v1594 = vpack.c.b16 %v1568, %v1567
  %v1595 = vpack.c.b16 %v1570, %v1569
  %v1596 = vpack.c.b16 %v1572, %v1571
  %v1597 = vpack.c.b16 %v1574, %v1573
  %v1598 = vpack.c.b16 %v1576, %v1575
  %v1599 = vpack.c.b16 %v1578, %v1577
  %v1600 = vpack.c.b16 %v1580, %v1579
  %v1601 = vpack.c.b16 %v1582, %v1581
  %v1602 = vpack.c.b16 %v1584, %v1583
  %v1603 = vpack.c.b16 %v1586, %v1585
  %v1604 = vpack.c.b16 %v1588, %v1587
  %1621 = vmatprep.subr.bf16.mxu0 0
  %1622 = vmatpush1.bf16.msra.mxu0 %v1589
  %1623 = vmatprep.subr.bf16.mxu0 0
  %1624 = vmatpush1.bf16.msra.mxu0 %v1590
  %1625 = vmatprep.subr.bf16.mxu0 0
  %1626 = vmatpush1.bf16.msra.mxu0 %v1591
  %1627 = vmatprep.subr.bf16.mxu0 0
  %1628 = vmatpush1.bf16.msra.mxu0 %v1592
  %1629 = vmatprep.subr.bf16.mxu0 0
  %1630 = vmatpush1.bf16.msra.mxu0 %v1593
  %1631 = vmatprep.subr.bf16.mxu0 0
  %1632 = vmatpush1.bf16.msra.mxu0 %v1594
  %1633 = vmatprep.subr.bf16.mxu0 0
  %1634 = vmatpush1.bf16.msra.mxu0 %v1595
  %1635 = vmatprep.subr.bf16.mxu0 0
  %1636 = vmatpush1.bf16.msra.mxu0 %v1596
  %1637 = vmatprep.subr.bf16.mxu0 0
  %1638 = vmatpush1.bf16.msra.mxu0 %v1597
  %1639 = vmatprep.subr.bf16.mxu0 0
  %1640 = vmatpush1.bf16.msra.mxu0 %v1598
  %1641 = vmatprep.subr.bf16.mxu0 0
  %1642 = vmatpush1.bf16.msra.mxu0 %v1599
  %1643 = vmatprep.subr.bf16.mxu0 0
  %1644 = vmatpush1.bf16.msra.mxu0 %v1600
  %1645 = vmatprep.subr.bf16.mxu0 0
  %1646 = vmatpush1.bf16.msra.mxu0 %v1601
  %1647 = vmatprep.subr.bf16.mxu0 0
  %1648 = vmatpush1.bf16.msra.mxu0 %v1602
  %1649 = vmatprep.subr.bf16.mxu0 0
  %1650 = vmatpush1.bf16.msra.mxu0 %v1603
  %1651 = vmatprep.subr.bf16.mxu0 0
  %1652 = vmatpush1.bf16.msra.mxu0 %v1604
  %1653 = vmatprep.mubr.bf16.mxu0 %v1485
  %1654 = vmatmul.mubr.bf16.gmra.mrb[0].mxu0 %v1484
  %v1655 = vpop.f32.mrb[0].mxu0
  %v1656 = vadd.f32 %v1523, %v1655
  %v1657 = vpop.f32.mrb[0].mxu0
  %v1658 = vpop.f32.mrb[0].mxu0
  %v1659 = vpop.f32.mrb[0].mxu0
  %1660 = vdwg.mxu0
  %1661 = vst [vmem:[%s10] sm:$0xff] %v1656
  // Predicated region
  $region42: #{lstm_forward.1} parent=0 // pred_check
    _
  $region43: #{lstm_forward.1} parent=0 // pred_check_branch
    %1663 = sbr.rel (0) target = $region45
  $region44: #{lstm_forward.1} parent=0 // pred_region
    _
  $region45: #{lstm_forward.1} parent=0 // pred_fallthru
    _
  // Predicated region
  $region46: #{lstm_forward.1} parent=0 // pred_check
    _
  $region47: #{lstm_forward.1} parent=0 // pred_check_branch
    %1665 = sbr.rel (0) target = $region49
  $region48: #{lstm_forward.1} parent=0 // pred_region
    _
  $region49: #{lstm_forward.1} parent=0 // pred_fallthru
    _

</llo_original>
